<compile_context>
chip_gen: v5e
topology: v5e:2x2
jax: 0.10.0
libtpu: 0.0.40
codegen_flags: <defaults>
</compile_context>

<pallas_src>
import functools

import jax
import jax.numpy as jnp
from jax import lax
from jax.experimental import pallas as pl
from jax.experimental.pallas import tpu as pltpu


# --------------------------- chip-aware VMEM limit --------------------------- #
@functools.lru_cache(maxsize=1)
def _vmem_limit_bytes():
    """~3/4 of physical VMEM, capped at 96 MiB (=> ~48 MiB on v7x, 96 MiB on
    v5e/v6e).  Falls back to a conservative 48 MiB if the query fails."""
    try:
        cap = pltpu.get_tpu_info().vmem_capacity_bytes
        return int(min(96 * 1024 * 1024, (cap * 3) // 4))
    except Exception:
        return 48 * 1024 * 1024


# ------------------------------ tiling helper ------------------------------- #
def _tile_and_pad(dim, target, align):
    """Return (tile, padded_dim).

    * dim <= target            -> use the full dim as the tile (always legal).
    * an aligned divisor >= target//2 exists -> use it, no padding.
    * otherwise                 -> pad dim up to a multiple of the target tile
                                   (avoids collapsing to tiny tiles for dims
                                   with large prime factors, e.g. N=197)."""
    if dim <= target:
        return dim, dim
    t = (target // align) * align
    if dim % t == 0:
        return t, dim
    floor = max(align, target // 2)
    tt = t - align
    while tt >= floor:
        if dim % tt == 0:
            return tt, dim
        tt -= align
    return t, ((dim + t - 1) // t) * t


# ------------------------------ linear kernel ------------------------------- #
def _linear_kernel(x_ref, w_ref, b_ref, o_ref, acc_ref):
    # x_ref: [tm, tk]   w_ref: [tk, tn] (pre-transposed [in, out] layout)
    # b_ref: [1, tn]    o_ref: [tm, tn] acc_ref: [tm, tn] f32
    @pl.when(pl.program_id(2) == 0)
    def _init():
        acc_ref[...] = jnp.zeros_like(acc_ref)

    # natural MXU contraction: x lane-axis against w sublane-axis (no vxpose)
    acc_ref[...] += jnp.dot(x_ref[...], w_ref[...],
                            preferred_element_type=jnp.float32)

    @pl.when(pl.program_id(2) == pl.num_programs(2) - 1)
    def _finalize():
        o_ref[...] = (acc_ref[...] + b_ref[...].astype(jnp.float32)).astype(o_ref.dtype)


def linear(x, w_t, b, *, tm=256, tn=512, tk=512):
    """y = x @ w_t + b with w_t already in [in_features, out_features] layout.

    Pads M/K/N up to tile multiples when needed (and crops the result) so the
    MXU tiles stay large even for non-factorable dims (e.g. B*N = 8*197)."""
    M, Cin = x.shape
    Cout = w_t.shape[1]

    m_align = 16 if x.dtype == jnp.bfloat16 else 8   # bf16 sublane packing
    tm, Mp = _tile_and_pad(M, tm, m_align)
    tn, Np = _tile_and_pad(Cout, tn, 128)
    tk, Kp = _tile_and_pad(Cin, tk, 128)

    if Mp != M or Kp != Cin:
        x = jnp.pad(x, ((0, Mp - M), (0, Kp - Cin)))
    if Kp != Cin or Np != Cout:
        w_t = jnp.pad(w_t, ((0, Kp - Cin), (0, Np - Cout)))
    if Np != Cout:
        b = jnp.pad(b, (0, Np - Cout))

    grid = (Mp // tm, Np // tn, Kp // tk)

    out = pl.pallas_call(
        _linear_kernel,
        out_shape=jax.ShapeDtypeStruct((Mp, Np), x.dtype),
        grid=grid,
        in_specs=[
            pl.BlockSpec((tm, tk), lambda i, j, kk: (i, kk)),
            pl.BlockSpec((tk, tn), lambda i, j, kk: (kk, j)),
            pl.BlockSpec((1, tn), lambda i, j, kk: (0, j)),
        ],
        out_specs=pl.BlockSpec((tm, tn), lambda i, j, kk: (i, j)),
        scratch_shapes=[pltpu.VMEM((tm, tn), jnp.float32)],
        compiler_params=pltpu.CompilerParams(
            dimension_semantics=("parallel", "parallel", "arbitrary"),
            vmem_limit_bytes=_vmem_limit_bytes(),
        ),
    )(x, w_t, b.reshape(1, Np))

    if Mp != M or Np != Cout:
        out = out[:M, :Cout]
    return out


# ----------------------------- attention kernel ------------------------------ #
def _attn_kernel(qkv_ref, o_ref, *, num_heads, head_dim, dim, exp_dtype):
    # qkv_ref: [1, N, 3C] lane-dense block (C = num_heads * head_dim)
    # o_ref:   [1, N, C]  lane-dense output block
    outs = []
    for h in range(num_heads):
        lo = h * head_dim
        hi = lo + head_dim
        # static lane-offset slices (scale already folded into the q weights)
        q = qkv_ref[0, :, lo:hi]                              # [N, D]
        k = qkv_ref[0, :, dim + lo:dim + hi]                  # [N, D]
        v = qkv_ref[0, :, 2 * dim + lo:2 * dim + hi]          # [N, D]

        # s = q @ k^T without an explicit transpose of k
        s = lax.dot_general(
            q, k, dimension_numbers=(((1,), (1,)), ((), ())),
            preferred_element_type=jnp.float32,
        )                                                     # [N, N] f32

        m = jnp.max(s, axis=-1, keepdims=True)                # f32 max
        p = jnp.exp((s - m).astype(exp_dtype))                # bf16 exp on bf16 runs
        l = jnp.sum(p.astype(jnp.float32), axis=-1, keepdims=True)  # f32 row-sum

        o = jnp.dot(p.astype(v.dtype), v,
                    preferred_element_type=jnp.float32)       # [N, D] f32
        # normalize after PV: [N,D] multiply instead of [N,N]; approx recip -> EUP
        o = o * pl.reciprocal(l, approx=True)
        outs.append(o.astype(o_ref.dtype))

    # one full-width lane-dense store (no per-head 64-lane masked stores)
    o_ref[0, :, :] = jnp.concatenate(outs, axis=-1)


def multihead_attention(qkv, num_heads):
    """qkv: [B, N, 3C] (lane-dense reshape of the qkv projection output)
       returns [B, N, C] with heads already merged."""
    B, N, C3 = qkv.shape
    C = C3 // 3
    D = C // num_heads
    exp_dtype = jnp.bfloat16 if qkv.dtype == jnp.bfloat16 else jnp.float32
    kernel = functools.partial(_attn_kernel, num_heads=num_heads,
                               head_dim=D, dim=C, exp_dtype=exp_dtype)
    return pl.pallas_call(
        kernel,
        out_shape=jax.ShapeDtypeStruct((B, N, C), qkv.dtype),
        grid=(B,),
        in_specs=[pl.BlockSpec((1, N, C3), lambda b: (b, 0, 0))],
        out_specs=pl.BlockSpec((1, N, C), lambda b: (b, 0, 0)),
        compiler_params=pltpu.CompilerParams(
            dimension_semantics=("parallel",),
            vmem_limit_bytes=_vmem_limit_bytes(),
        ),
    )(qkv)


# --------------------------------- module ------------------------------------ #
def init_attention_params(key, dim, num_heads, qkv_bias=False, dtype=jnp.float32):
    """Deterministic init mimicking nn.Linear default (uniform +/- 1/sqrt(fan_in)).
    Weights stored PyTorch-style: [out_features, in_features]."""
    k1, k2, k3, k4 = jax.random.split(key, 4)
    bound = 1.0 / (dim ** 0.5)
    return {
        "w_qkv": jax.random.uniform(k1, (3 * dim, dim), dtype, -bound, bound),
        "b_qkv": (jax.random.uniform(k3, (3 * dim,), dtype, -bound, bound)
                  if qkv_bias else jnp.zeros((3 * dim,), dtype)),
        "w_proj": jax.random.uniform(k2, (dim, dim), dtype, -bound, bound),
        "b_proj": jax.random.uniform(k4, (dim,), dtype, -bound, bound),
    }


def prepare_params(params, dim, num_heads):
    """One-time (runtime-free) transforms:
       * transpose weights to [in_features, out_features] (no vxpose in-kernel)
       * fold the softmax scale into the q-third of the qkv weights/bias."""
    head_dim = dim // num_heads
    scale = head_dim ** (-0.5)
    w_qkv = params["w_qkv"]                       # [3C, C] (q rows first)
    b_qkv = params["b_qkv"]                       # [3C]
    q_scale = jnp.concatenate([
        jnp.full((dim,), scale, w_qkv.dtype),
        jnp.ones((2 * dim,), w_qkv.dtype),
    ])
    w_qkv = w_qkv * q_scale[:, None]
    b_qkv = b_qkv * q_scale
    return {
        "w_qkv_t": jnp.asarray(w_qkv.T),          # [C, 3C]
        "b_qkv": b_qkv,
        "w_proj_t": jnp.asarray(params["w_proj"].T),  # [C, C]
        "b_proj": params["b_proj"],
    }


def attention_forward(x, prep, num_heads):
    B, N, C = x.shape
    x2 = x.reshape(B * N, C)

    # qkv projection (weights already [in, out]; scale folded into q columns)
    qkv = linear(x2, prep["w_qkv_t"], prep["b_qkv"])    # [B*N, 3C]
    qkv = qkv.reshape(B, N, 3 * C)                      # free, lane-dense reshape

    # attention: lane-dense [B, N, 3C] in, merged-head [B, N, C] out
    out = multihead_attention(qkv, num_heads)           # [B, N, C]

    # output projection
    y = linear(out.reshape(B * N, C), prep["w_proj_t"], prep["b_proj"])
    return y.reshape(B, N, C)


# pure-JAX reference (PyTorch semantics) for verification
def attention_reference(x, params, num_heads):
    B, N, C = x.shape
    head_dim = C // num_heads
    scale = head_dim ** (-0.5)
    qkv = x @ params["w_qkv"].T + params["b_qkv"]
    qkv = qkv.reshape(B, N, 3, num_heads, head_dim).transpose(2, 0, 3, 1, 4)
    q, k, v = qkv[0], qkv[1], qkv[2]
    attn = (q @ jnp.swapaxes(k, -2, -1)) * scale
    attn = jax.nn.softmax(attn, axis=-1)
    out = (attn @ v).transpose(0, 2, 1, 3).reshape(B, N, C)
    return out @ params["w_proj"].T + params["b_proj"]


if __name__ == "__main__":
    B, N, C, H = 2, 8, 32, 8   # batch=2, seq=8, dim=32, num_heads=8 (head_dim=4)

    key = jax.random.PRNGKey(0)
    kx, kp = jax.random.split(key)
    x = jax.random.normal(kx, (B, N, C), jnp.float32)
    params = init_attention_params(kp, C, H, qkv_bias=False)
    prep = prepare_params(params, C, H)

    y = jax.jit(functools.partial(attention_forward, num_heads=H))(x, prep)
    y = jax.block_until_ready(y)

    y_ref = attention_reference(x, params, H)
    assert y.shape == (B, N, C)
    # tolerance accounts for the approx (EUP) reciprocal in the softmax normalization
    assert jnp.allclose(y, y_ref, atol=2e-2, rtol=2e-2), "mismatch vs reference"

    print("KERNEL_OK")
</pallas_src>

<mosaic_0001>
module attributes {stable_mosaic.version = 11 : i64} {
  func.func @_linear_kernel(%arg0: i32, %arg1: i32, %arg2: i32, %arg3: memref<16x32xf32, #tpu.memory_space<vmem>>, %arg4: memref<32x32xf32, #tpu.memory_space<vmem>>, %arg5: memref<1x32xf32, #tpu.memory_space<vmem>>, %arg6: memref<16x32xf32, #tpu.memory_space<vmem>>, %arg7: memref<16x32xf32, #tpu.memory_space<vmem>>) attributes {dimension_semantics = [#tpu.dimension_semantics<parallel>, #tpu.dimension_semantics<parallel>, #tpu.dimension_semantics<arbitrary>], iteration_bounds = array<i64: 1, 1, 1>, scalar_prefetch = 0 : i64, scratch_operands = 1 : i64, tpu.core_type = #tpu.core_type<tc>, window_params = [{transform_indices = @transform_0, window_bounds = array<i64: 16, 32>}, {transform_indices = @transform_1, window_bounds = array<i64: 32, 32>}, {transform_indices = @transform_2, window_bounds = array<i64: 1, 32>}, {transform_indices = @transform_3, window_bounds = array<i64: 16, 32>}]} {
    %c0_i32 = arith.constant 0 : i32
    %0 = arith.cmpi eq, %arg2, %c0_i32 : i32
    %1 = arith.extui %0 : i1 to i32
    %c0_i32_0 = arith.constant 0 : i32
    %2 = arith.cmpi ne, %1, %c0_i32_0 : i32
    scf.if %2 {
      %cst_10 = arith.constant 0.000000e+00 : f32
      %12 = vector.broadcast %cst_10 : f32 to vector<16x32xf32>
      %c0_11 = arith.constant 0 : index
      %c0_12 = arith.constant 0 : index
      %13 = vector.load %arg7[%c0_11, %c0_12] : memref<16x32xf32, #tpu.memory_space<vmem>>, vector<16x32xf32>
      tpu.vector_store %arg7[%c0_11, %c0_12], %12 {strides = array<i32>} : memref<16x32xf32, #tpu.memory_space<vmem>>, vector<16x32xf32>,
    } else {
    }
    %c0 = arith.constant 0 : index
    %c0_1 = arith.constant 0 : index
    %3 = vector.load %arg7[%c0, %c0_1] : memref<16x32xf32, #tpu.memory_space<vmem>>, vector<16x32xf32>
    %c0_2 = arith.constant 0 : index
    %c0_3 = arith.constant 0 : index
    %4 = vector.load %arg3[%c0_2, %c0_3] : memref<16x32xf32, #tpu.memory_space<vmem>>, vector<16x32xf32>
    %c0_4 = arith.constant 0 : index
    %c0_5 = arith.constant 0 : index
    %5 = vector.load %arg4[%c0_4, %c0_5] : memref<32x32xf32, #tpu.memory_space<vmem>>, vector<32x32xf32>
    %cst = arith.constant dense<0.000000e+00> : vector<16x32xf32>
    %6 = tpu.matmul %4, %5, %cst {dimension_numbers = #tpu.dot_dimension_numbers<[1], [0], [0], [1], [0, 0, 1, 1], [], []>} : vector<16x32xf32>, vector<32x32xf32>, vector<16x32xf32> -> vector<16x32xf32>
    %7 = arith.addf %3, %6 : vector<16x32xf32>
    %c0_6 = arith.constant 0 : index
    %c0_7 = arith.constant 0 : index
    %8 = vector.load %arg7[%c0_6, %c0_7] : memref<16x32xf32, #tpu.memory_space<vmem>>, vector<16x32xf32>
    tpu.vector_store %arg7[%c0_6, %c0_7], %7 {strides = array<i32>} : memref<16x32xf32, #tpu.memory_space<vmem>>, vector<16x32xf32>,
    %c0_i32_8 = arith.constant 0 : i32
    %9 = arith.cmpi eq, %arg2, %c0_i32_8 : i32
    %10 = arith.extui %9 : i1 to i32
    %c0_i32_9 = arith.constant 0 : i32
    %11 = arith.cmpi ne, %10, %c0_i32_9 : i32
    scf.if %11 {
      %c0_10 = arith.constant 0 : index
      %c0_11 = arith.constant 0 : index
      %12 = vector.load %arg7[%c0_10, %c0_11] : memref<16x32xf32, #tpu.memory_space<vmem>>, vector<16x32xf32>
      %c0_12 = arith.constant 0 : index
      %c0_13 = arith.constant 0 : index
      %13 = vector.load %arg5[%c0_12, %c0_13] : memref<1x32xf32, #tpu.memory_space<vmem>>, vector<1x32xf32>
      %14 = vector.broadcast %13 : vector<1x32xf32> to vector<16x32xf32>
      %15 = arith.addf %12, %14 : vector<16x32xf32>
      %c0_14 = arith.constant 0 : index
      %c0_15 = arith.constant 0 : index
      %16 = vector.load %arg6[%c0_14, %c0_15] : memref<16x32xf32, #tpu.memory_space<vmem>>, vector<16x32xf32>
      tpu.vector_store %arg6[%c0_14, %c0_15], %15 {strides = array<i32>} : memref<16x32xf32, #tpu.memory_space<vmem>>, vector<16x32xf32>,
    } else {
    }
    return
  }
  func.func @transform_0(%arg0: i32, %arg1: i32, %arg2: i32) -> (i32, i32) {
    %c0_i32 = arith.constant 0 : i32
    return %arg0, %arg2 : i32, i32
  }
  func.func @transform_1(%arg0: i32, %arg1: i32, %arg2: i32) -> (i32, i32) {
    %c0_i32 = arith.constant 0 : i32
    return %arg2, %arg1 : i32, i32
  }
  func.func @transform_2(%arg0: i32, %arg1: i32, %arg2: i32) -> (i32, i32) {
    %c0_i32 = arith.constant 0 : i32
    %c0_i32_0 = arith.constant 0 : i32
    return %c0_i32, %arg1 : i32, i32
  }
  func.func @transform_3(%arg0: i32, %arg1: i32, %arg2: i32) -> (i32, i32) {
    %c0_i32 = arith.constant 0 : i32
    return %arg0, %arg1 : i32, i32
  }
}

module attributes {stable_mosaic.version = 11 : i64} {
  func.func @_attn_kernel(%arg0: i32, %arg1: memref<1x8x96xf32, #tpu.memory_space<vmem>>, %arg2: memref<1x8x32xf32, #tpu.memory_space<vmem>>) attributes {dimension_semantics = [#tpu.dimension_semantics<parallel>], iteration_bounds = array<i64: 2>, scalar_prefetch = 0 : i64, scratch_operands = 0 : i64, tpu.core_type = #tpu.core_type<tc>, window_params = [{transform_indices = @transform_0, window_bounds = array<i64: 1, 8, 96>}, {transform_indices = @transform_1, window_bounds = array<i64: 1, 8, 32>}]} {
    %c0 = arith.constant 0 : index
    %c0_0 = arith.constant 0 : index
    %c0_1 = arith.constant 0 : index
    %0 = vector.load %arg1[%c0, %c0_0, %c0_1] : memref<1x8x96xf32, #tpu.memory_space<vmem>>, vector<1x8x4xf32>
    %1 = vector.shape_cast %0 : vector<1x8x4xf32> to vector<8x4xf32>
    %c0_2 = arith.constant 0 : index
    %c0_3 = arith.constant 0 : index
    %c32 = arith.constant 32 : index
    %2 = vector.load %arg1[%c0_2, %c0_3, %c32] : memref<1x8x96xf32, #tpu.memory_space<vmem>>, vector<1x8x4xf32>
    %3 = vector.shape_cast %2 : vector<1x8x4xf32> to vector<8x4xf32>
    %c0_4 = arith.constant 0 : index
    %c0_5 = arith.constant 0 : index
    %c64 = arith.constant 64 : index
    %4 = vector.load %arg1[%c0_4, %c0_5, %c64] : memref<1x8x96xf32, #tpu.memory_space<vmem>>, vector<1x8x4xf32>
    %5 = vector.shape_cast %4 : vector<1x8x4xf32> to vector<8x4xf32>
    %cst = arith.constant dense<0.000000e+00> : vector<8x8xf32>
    %6 = tpu.matmul %1, %3, %cst {dimension_numbers = #tpu.dot_dimension_numbers<[1], [1], [0], [0], [0, 0, 1, 0], [], []>} : vector<8x4xf32>, vector<8x4xf32>, vector<8x8xf32> -> vector<8x8xf32>
    %cst_6 = arith.constant dense<0xFF800000> : vector<8xf32>
    %7 = vector.multi_reduction <maximumf>, %6, %cst_6 [1] : vector<8x8xf32> to vector<8xf32>
    %8 = vector.shape_cast %7 : vector<8xf32> to vector<8x1xf32>
    %9 = vector.broadcast %8 : vector<8x1xf32> to vector<8x8xf32>
    %10 = arith.subf %6, %9 : vector<8x8xf32>
    %11 = math.exp %10 : vector<8x8xf32>
    %cst_7 = arith.constant dense<0.000000e+00> : vector<8xf32>
    %12 = vector.multi_reduction <add>, %11, %cst_7 [1] : vector<8x8xf32> to vector<8xf32>
    %13 = vector.shape_cast %12 : vector<8xf32> to vector<8x1xf32>
    %cst_8 = arith.constant dense<0.000000e+00> : vector<8x4xf32>
    %14 = tpu.matmul %11, %5, %cst_8 {dimension_numbers = #tpu.dot_dimension_numbers<[1], [0], [0], [1], [0, 0, 1, 1], [], []>} : vector<8x8xf32>, vector<8x4xf32>, vector<8x4xf32> -> vector<8x4xf32>
    %15 = tpu.reciprocal %13 {approx = true} : vector<8x1xf32> -> vector<8x1xf32>
    %16 = vector.broadcast %15 : vector<8x1xf32> to vector<8x4xf32>
    %17 = arith.mulf %14, %16 : vector<8x4xf32>
    %c0_9 = arith.constant 0 : index
    %c0_10 = arith.constant 0 : index
    %c4 = arith.constant 4 : index
    %18 = vector.load %arg1[%c0_9, %c0_10, %c4] : memref<1x8x96xf32, #tpu.memory_space<vmem>>, vector<1x8x4xf32>
    %19 = vector.shape_cast %18 : vector<1x8x4xf32> to vector<8x4xf32>
    %c0_11 = arith.constant 0 : index
    %c0_12 = arith.constant 0 : index
    %c36 = arith.constant 36 : index
    %20 = vector.load %arg1[%c0_11, %c0_12, %c36] : memref<1x8x96xf32, #tpu.memory_space<vmem>>, vector<1x8x4xf32>
    %21 = vector.shape_cast %20 : vector<1x8x4xf32> to vector<8x4xf32>
    %c0_13 = arith.constant 0 : index
    %c0_14 = arith.constant 0 : index
    %c68 = arith.constant 68 : index
    %22 = vector.load %arg1[%c0_13, %c0_14, %c68] : memref<1x8x96xf32, #tpu.memory_space<vmem>>, vector<1x8x4xf32>
    %23 = vector.shape_cast %22 : vector<1x8x4xf32> to vector<8x4xf32>
    %cst_15 = arith.constant dense<0.000000e+00> : vector<8x8xf32>
    %24 = tpu.matmul %19, %21, %cst_15 {dimension_numbers = #tpu.dot_dimension_numbers<[1], [1], [0], [0], [0, 0, 1, 0], [], []>} : vector<8x4xf32>, vector<8x4xf32>, vector<8x8xf32> -> vector<8x8xf32>
    %cst_16 = arith.constant dense<0xFF800000> : vector<8xf32>
    %25 = vector.multi_reduction <maximumf>, %24, %cst_16 [1] : vector<8x8xf32> to vector<8xf32>
    %26 = vector.shape_cast %25 : vector<8xf32> to vector<8x1xf32>
    %27 = vector.broadcast %26 : vector<8x1xf32> to vector<8x8xf32>
    %28 = arith.subf %24, %27 : vector<8x8xf32>
    %29 = math.exp %28 : vector<8x8xf32>
    %cst_17 = arith.constant dense<0.000000e+00> : vector<8xf32>
    %30 = vector.multi_reduction <add>, %29, %cst_17 [1] : vector<8x8xf32> to vector<8xf32>
    %31 = vector.shape_cast %30 : vector<8xf32> to vector<8x1xf32>
    %cst_18 = arith.constant dense<0.000000e+00> : vector<8x4xf32>
    %32 = tpu.matmul %29, %23, %cst_18 {dimension_numbers = #tpu.dot_dimension_numbers<[1], [0], [0], [1], [0, 0, 1, 1], [], []>} : vector<8x8xf32>, vector<8x4xf32>, vector<8x4xf32> -> vector<8x4xf32>
    %33 = tpu.reciprocal %31 {approx = true} : vector<8x1xf32> -> vector<8x1xf32>
    %34 = vector.broadcast %33 : vector<8x1xf32> to vector<8x4xf32>
    %35 = arith.mulf %32, %34 : vector<8x4xf32>
    %c0_19 = arith.constant 0 : index
    %c0_20 = arith.constant 0 : index
    %c8 = arith.constant 8 : index
    %36 = vector.load %arg1[%c0_19, %c0_20, %c8] : memref<1x8x96xf32, #tpu.memory_space<vmem>>, vector<1x8x4xf32>
    %37 = vector.shape_cast %36 : vector<1x8x4xf32> to vector<8x4xf32>
    %c0_21 = arith.constant 0 : index
    %c0_22 = arith.constant 0 : index
    %c40 = arith.constant 40 : index
    %38 = vector.load %arg1[%c0_21, %c0_22, %c40] : memref<1x8x96xf32, #tpu.memory_space<vmem>>, vector<1x8x4xf32>
    %39 = vector.shape_cast %38 : vector<1x8x4xf32> to vector<8x4xf32>
    %c0_23 = arith.constant 0 : index
    %c0_24 = arith.constant 0 : index
    %c72 = arith.constant 72 : index
    %40 = vector.load %arg1[%c0_23, %c0_24, %c72] : memref<1x8x96xf32, #tpu.memory_space<vmem>>, vector<1x8x4xf32>
    %41 = vector.shape_cast %40 : vector<1x8x4xf32> to vector<8x4xf32>
    %cst_25 = arith.constant dense<0.000000e+00> : vector<8x8xf32>
    %42 = tpu.matmul %37, %39, %cst_25 {dimension_numbers = #tpu.dot_dimension_numbers<[1], [1], [0], [0], [0, 0, 1, 0], [], []>} : vector<8x4xf32>, vector<8x4xf32>, vector<8x8xf32> -> vector<8x8xf32>
    %cst_26 = arith.constant dense<0xFF800000> : vector<8xf32>
    %43 = vector.multi_reduction <maximumf>, %42, %cst_26 [1] : vector<8x8xf32> to vector<8xf32>
    %44 = vector.shape_cast %43 : vector<8xf32> to vector<8x1xf32>
    %45 = vector.broadcast %44 : vector<8x1xf32> to vector<8x8xf32>
    %46 = arith.subf %42, %45 : vector<8x8xf32>
    %47 = math.exp %46 : vector<8x8xf32>
    %cst_27 = arith.constant dense<0.000000e+00> : vector<8xf32>
    %48 = vector.multi_reduction <add>, %47, %cst_27 [1] : vector<8x8xf32> to vector<8xf32>
    %49 = vector.shape_cast %48 : vector<8xf32> to vector<8x1xf32>
    %cst_28 = arith.constant dense<0.000000e+00> : vector<8x4xf32>
    %50 = tpu.matmul %47, %41, %cst_28 {dimension_numbers = #tpu.dot_dimension_numbers<[1], [0], [0], [1], [0, 0, 1, 1], [], []>} : vector<8x8xf32>, vector<8x4xf32>, vector<8x4xf32> -> vector<8x4xf32>
    %51 = tpu.reciprocal %49 {approx = true} : vector<8x1xf32> -> vector<8x1xf32>
    %52 = vector.broadcast %51 : vector<8x1xf32> to vector<8x4xf32>
    %53 = arith.mulf %50, %52 : vector<8x4xf32>
    %c0_29 = arith.constant 0 : index
    %c0_30 = arith.constant 0 : index
    %c12 = arith.constant 12 : index
    %54 = vector.load %arg1[%c0_29, %c0_30, %c12] : memref<1x8x96xf32, #tpu.memory_space<vmem>>, vector<1x8x4xf32>
    %55 = vector.shape_cast %54 : vector<1x8x4xf32> to vector<8x4xf32>
    %c0_31 = arith.constant 0 : index
    %c0_32 = arith.constant 0 : index
    %c44 = arith.constant 44 : index
    %56 = vector.load %arg1[%c0_31, %c0_32, %c44] : memref<1x8x96xf32, #tpu.memory_space<vmem>>, vector<1x8x4xf32>
    %57 = vector.shape_cast %56 : vector<1x8x4xf32> to vector<8x4xf32>
    %c0_33 = arith.constant 0 : index
    %c0_34 = arith.constant 0 : index
    %c76 = arith.constant 76 : index
    %58 = vector.load %arg1[%c0_33, %c0_34, %c76] : memref<1x8x96xf32, #tpu.memory_space<vmem>>, vector<1x8x4xf32>
    %59 = vector.shape_cast %58 : vector<1x8x4xf32> to vector<8x4xf32>
    %cst_35 = arith.constant dense<0.000000e+00> : vector<8x8xf32>
    %60 = tpu.matmul %55, %57, %cst_35 {dimension_numbers = #tpu.dot_dimension_numbers<[1], [1], [0], [0], [0, 0, 1, 0], [], []>} : vector<8x4xf32>, vector<8x4xf32>, vector<8x8xf32> -> vector<8x8xf32>
    %cst_36 = arith.constant dense<0xFF800000> : vector<8xf32>
    %61 = vector.multi_reduction <maximumf>, %60, %cst_36 [1] : vector<8x8xf32> to vector<8xf32>
    %62 = vector.shape_cast %61 : vector<8xf32> to vector<8x1xf32>
    %63 = vector.broadcast %62 : vector<8x1xf32> to vector<8x8xf32>
    %64 = arith.subf %60, %63 : vector<8x8xf32>
    %65 = math.exp %64 : vector<8x8xf32>
    %cst_37 = arith.constant dense<0.000000e+00> : vector<8xf32>
    %66 = vector.multi_reduction <add>, %65, %cst_37 [1] : vector<8x8xf32> to vector<8xf32>
    %67 = vector.shape_cast %66 : vector<8xf32> to vector<8x1xf32>
    %cst_38 = arith.constant dense<0.000000e+00> : vector<8x4xf32>
    %68 = tpu.matmul %65, %59, %cst_38 {dimension_numbers = #tpu.dot_dimension_numbers<[1], [0], [0], [1], [0, 0, 1, 1], [], []>} : vector<8x8xf32>, vector<8x4xf32>, vector<8x4xf32> -> vector<8x4xf32>
    %69 = tpu.reciprocal %67 {approx = true} : vector<8x1xf32> -> vector<8x1xf32>
    %70 = vector.broadcast %69 : vector<8x1xf32> to vector<8x4xf32>
    %71 = arith.mulf %68, %70 : vector<8x4xf32>
    %c0_39 = arith.constant 0 : index
    %c0_40 = arith.constant 0 : index
    %c16 = arith.constant 16 : index
    %72 = vector.load %arg1[%c0_39, %c0_40, %c16] : memref<1x8x96xf32, #tpu.memory_space<vmem>>, vector<1x8x4xf32>
    %73 = vector.shape_cast %72 : vector<1x8x4xf32> to vector<8x4xf32>
    %c0_41 = arith.constant 0 : index
    %c0_42 = arith.constant 0 : index
    %c48 = arith.constant 48 : index
    %74 = vector.load %arg1[%c0_41, %c0_42, %c48] : memref<1x8x96xf32, #tpu.memory_space<vmem>>, vector<1x8x4xf32>
    %75 = vector.shape_cast %74 : vector<1x8x4xf32> to vector<8x4xf32>
    %c0_43 = arith.constant 0 : index
    %c0_44 = arith.constant 0 : index
    %c80 = arith.constant 80 : index
    %76 = vector.load %arg1[%c0_43, %c0_44, %c80] : memref<1x8x96xf32, #tpu.memory_space<vmem>>, vector<1x8x4xf32>
    %77 = vector.shape_cast %76 : vector<1x8x4xf32> to vector<8x4xf32>
    %cst_45 = arith.constant dense<0.000000e+00> : vector<8x8xf32>
    %78 = tpu.matmul %73, %75, %cst_45 {dimension_numbers = #tpu.dot_dimension_numbers<[1], [1], [0], [0], [0, 0, 1, 0], [], []>} : vector<8x4xf32>, vector<8x4xf32>, vector<8x8xf32> -> vector<8x8xf32>
    %cst_46 = arith.constant dense<0xFF800000> : vector<8xf32>
    %79 = vector.multi_reduction <maximumf>, %78, %cst_46 [1] : vector<8x8xf32> to vector<8xf32>
    %80 = vector.shape_cast %79 : vector<8xf32> to vector<8x1xf32>
    %81 = vector.broadcast %80 : vector<8x1xf32> to vector<8x8xf32>
    %82 = arith.subf %78, %81 : vector<8x8xf32>
    %83 = math.exp %82 : vector<8x8xf32>
    %cst_47 = arith.constant dense<0.000000e+00> : vector<8xf32>
    %84 = vector.multi_reduction <add>, %83, %cst_47 [1] : vector<8x8xf32> to vector<8xf32>
    %85 = vector.shape_cast %84 : vector<8xf32> to vector<8x1xf32>
    %cst_48 = arith.constant dense<0.000000e+00> : vector<8x4xf32>
    %86 = tpu.matmul %83, %77, %cst_48 {dimension_numbers = #tpu.dot_dimension_numbers<[1], [0], [0], [1], [0, 0, 1, 1], [], []>} : vector<8x8xf32>, vector<8x4xf32>, vector<8x4xf32> -> vector<8x4xf32>
    %87 = tpu.reciprocal %85 {approx = true} : vector<8x1xf32> -> vector<8x1xf32>
    %88 = vector.broadcast %87 : vector<8x1xf32> to vector<8x4xf32>
    %89 = arith.mulf %86, %88 : vector<8x4xf32>
    %c0_49 = arith.constant 0 : index
    %c0_50 = arith.constant 0 : index
    %c20 = arith.constant 20 : index
    %90 = vector.load %arg1[%c0_49, %c0_50, %c20] : memref<1x8x96xf32, #tpu.memory_space<vmem>>, vector<1x8x4xf32>
    %91 = vector.shape_cast %90 : vector<1x8x4xf32> to vector<8x4xf32>
    %c0_51 = arith.constant 0 : index
    %c0_52 = arith.constant 0 : index
    %c52 = arith.constant 52 : index
    %92 = vector.load %arg1[%c0_51, %c0_52, %c52] : memref<1x8x96xf32, #tpu.memory_space<vmem>>, vector<1x8x4xf32>
    %93 = vector.shape_cast %92 : vector<1x8x4xf32> to vector<8x4xf32>
    %c0_53 = arith.constant 0 : index
    %c0_54 = arith.constant 0 : index
    %c84 = arith.constant 84 : index
    %94 = vector.load %arg1[%c0_53, %c0_54, %c84] : memref<1x8x96xf32, #tpu.memory_space<vmem>>, vector<1x8x4xf32>
    %95 = vector.shape_cast %94 : vector<1x8x4xf32> to vector<8x4xf32>
    %cst_55 = arith.constant dense<0.000000e+00> : vector<8x8xf32>
    %96 = tpu.matmul %91, %93, %cst_55 {dimension_numbers = #tpu.dot_dimension_numbers<[1], [1], [0], [0], [0, 0, 1, 0], [], []>} : vector<8x4xf32>, vector<8x4xf32>, vector<8x8xf32> -> vector<8x8xf32>
    %cst_56 = arith.constant dense<0xFF800000> : vector<8xf32>
    %97 = vector.multi_reduction <maximumf>, %96, %cst_56 [1] : vector<8x8xf32> to vector<8xf32>
    %98 = vector.shape_cast %97 : vector<8xf32> to vector<8x1xf32>
    %99 = vector.broadcast %98 : vector<8x1xf32> to vector<8x8xf32>
    %100 = arith.subf %96, %99 : vector<8x8xf32>
    %101 = math.exp %100 : vector<8x8xf32>
    %cst_57 = arith.constant dense<0.000000e+00> : vector<8xf32>
    %102 = vector.multi_reduction <add>, %101, %cst_57 [1] : vector<8x8xf32> to vector<8xf32>
    %103 = vector.shape_cast %102 : vector<8xf32> to vector<8x1xf32>
    %cst_58 = arith.constant dense<0.000000e+00> : vector<8x4xf32>
    %104 = tpu.matmul %101, %95, %cst_58 {dimension_numbers = #tpu.dot_dimension_numbers<[1], [0], [0], [1], [0, 0, 1, 1], [], []>} : vector<8x8xf32>, vector<8x4xf32>, vector<8x4xf32> -> vector<8x4xf32>
    %105 = tpu.reciprocal %103 {approx = true} : vector<8x1xf32> -> vector<8x1xf32>
    %106 = vector.broadcast %105 : vector<8x1xf32> to vector<8x4xf32>
    %107 = arith.mulf %104, %106 : vector<8x4xf32>
    %c0_59 = arith.constant 0 : index
    %c0_60 = arith.constant 0 : index
    %c24 = arith.constant 24 : index
    %108 = vector.load %arg1[%c0_59, %c0_60, %c24] : memref<1x8x96xf32, #tpu.memory_space<vmem>>, vector<1x8x4xf32>
    %109 = vector.shape_cast %108 : vector<1x8x4xf32> to vector<8x4xf32>
    %c0_61 = arith.constant 0 : index
    %c0_62 = arith.constant 0 : index
    %c56 = arith.constant 56 : index
    %110 = vector.load %arg1[%c0_61, %c0_62, %c56] : memref<1x8x96xf32, #tpu.memory_space<vmem>>, vector<1x8x4xf32>
    %111 = vector.shape_cast %110 : vector<1x8x4xf32> to vector<8x4xf32>
    %c0_63 = arith.constant 0 : index
    %c0_64 = arith.constant 0 : index
    %c88 = arith.constant 88 : index
    %112 = vector.load %arg1[%c0_63, %c0_64, %c88] : memref<1x8x96xf32, #tpu.memory_space<vmem>>, vector<1x8x4xf32>
    %113 = vector.shape_cast %112 : vector<1x8x4xf32> to vector<8x4xf32>
    %cst_65 = arith.constant dense<0.000000e+00> : vector<8x8xf32>
    %114 = tpu.matmul %109, %111, %cst_65 {dimension_numbers = #tpu.dot_dimension_numbers<[1], [1], [0], [0], [0, 0, 1, 0], [], []>} : vector<8x4xf32>, vector<8x4xf32>, vector<8x8xf32> -> vector<8x8xf32>
    %cst_66 = arith.constant dense<0xFF800000> : vector<8xf32>
    %115 = vector.multi_reduction <maximumf>, %114, %cst_66 [1] : vector<8x8xf32> to vector<8xf32>
    %116 = vector.shape_cast %115 : vector<8xf32> to vector<8x1xf32>
    %117 = vector.broadcast %116 : vector<8x1xf32> to vector<8x8xf32>
    %118 = arith.subf %114, %117 : vector<8x8xf32>
    %119 = math.exp %118 : vector<8x8xf32>
    %cst_67 = arith.constant dense<0.000000e+00> : vector<8xf32>
    %120 = vector.multi_reduction <add>, %119, %cst_67 [1] : vector<8x8xf32> to vector<8xf32>
    %121 = vector.shape_cast %120 : vector<8xf32> to vector<8x1xf32>
    %cst_68 = arith.constant dense<0.000000e+00> : vector<8x4xf32>
    %122 = tpu.matmul %119, %113, %cst_68 {dimension_numbers = #tpu.dot_dimension_numbers<[1], [0], [0], [1], [0, 0, 1, 1], [], []>} : vector<8x8xf32>, vector<8x4xf32>, vector<8x4xf32> -> vector<8x4xf32>
    %123 = tpu.reciprocal %121 {approx = true} : vector<8x1xf32> -> vector<8x1xf32>
    %124 = vector.broadcast %123 : vector<8x1xf32> to vector<8x4xf32>
    %125 = arith.mulf %122, %124 : vector<8x4xf32>
    %c0_69 = arith.constant 0 : index
    %c0_70 = arith.constant 0 : index
    %c28 = arith.constant 28 : index
    %126 = vector.load %arg1[%c0_69, %c0_70, %c28] : memref<1x8x96xf32, #tpu.memory_space<vmem>>, vector<1x8x4xf32>
    %127 = vector.shape_cast %126 : vector<1x8x4xf32> to vector<8x4xf32>
    %c0_71 = arith.constant 0 : index
    %c0_72 = arith.constant 0 : index
    %c60 = arith.constant 60 : index
    %128 = vector.load %arg1[%c0_71, %c0_72, %c60] : memref<1x8x96xf32, #tpu.memory_space<vmem>>, vector<1x8x4xf32>
    %129 = vector.shape_cast %128 : vector<1x8x4xf32> to vector<8x4xf32>
    %c0_73 = arith.constant 0 : index
    %c0_74 = arith.constant 0 : index
    %c92 = arith.constant 92 : index
    %130 = vector.load %arg1[%c0_73, %c0_74, %c92] : memref<1x8x96xf32, #tpu.memory_space<vmem>>, vector<1x8x4xf32>
    %131 = vector.shape_cast %130 : vector<1x8x4xf32> to vector<8x4xf32>
    %cst_75 = arith.constant dense<0.000000e+00> : vector<8x8xf32>
    %132 = tpu.matmul %127, %129, %cst_75 {dimension_numbers = #tpu.dot_dimension_numbers<[1], [1], [0], [0], [0, 0, 1, 0], [], []>} : vector<8x4xf32>, vector<8x4xf32>, vector<8x8xf32> -> vector<8x8xf32>
    %cst_76 = arith.constant dense<0xFF800000> : vector<8xf32>
    %133 = vector.multi_reduction <maximumf>, %132, %cst_76 [1] : vector<8x8xf32> to vector<8xf32>
    %134 = vector.shape_cast %133 : vector<8xf32> to vector<8x1xf32>
    %135 = vector.broadcast %134 : vector<8x1xf32> to vector<8x8xf32>
    %136 = arith.subf %132, %135 : vector<8x8xf32>
    %137 = math.exp %136 : vector<8x8xf32>
    %cst_77 = arith.constant dense<0.000000e+00> : vector<8xf32>
    %138 = vector.multi_reduction <add>, %137, %cst_77 [1] : vector<8x8xf32> to vector<8xf32>
    %139 = vector.shape_cast %138 : vector<8xf32> to vector<8x1xf32>
    %cst_78 = arith.constant dense<0.000000e+00> : vector<8x4xf32>
    %140 = tpu.matmul %137, %131, %cst_78 {dimension_numbers = #tpu.dot_dimension_numbers<[1], [0], [0], [1], [0, 0, 1, 1], [], []>} : vector<8x8xf32>, vector<8x4xf32>, vector<8x4xf32> -> vector<8x4xf32>
    %141 = tpu.reciprocal %139 {approx = true} : vector<8x1xf32> -> vector<8x1xf32>
    %142 = vector.broadcast %141 : vector<8x1xf32> to vector<8x4xf32>
    %143 = arith.mulf %140, %142 : vector<8x4xf32>
    %144 = tpu.concatenate %17, %35, %53, %71, %89, %107, %125, %143 in 1 : vector<8x4xf32>, vector<8x4xf32>, vector<8x4xf32>, vector<8x4xf32>, vector<8x4xf32>, vector<8x4xf32>, vector<8x4xf32>, vector<8x4xf32> -> vector<8x32xf32>
    %c0_79 = arith.constant 0 : index
    %c0_80 = arith.constant 0 : index
    %c0_81 = arith.constant 0 : index
    %145 = vector.load %arg2[%c0_79, %c0_80, %c0_81] : memref<1x8x32xf32, #tpu.memory_space<vmem>>, vector<1x8x32xf32>
    %146 = vector.shape_cast %145 : vector<1x8x32xf32> to vector<8x32xf32>
    %147 = vector.shape_cast %144 : vector<8x32xf32> to vector<1x8x32xf32>
    tpu.vector_store %arg2[%c0_79, %c0_80, %c0_81], %147 {strides = array<i32>} : memref<1x8x32xf32, #tpu.memory_space<vmem>>, vector<1x8x32xf32>,
    return
  }
  func.func @transform_0(%arg0: i32) -> (i32, i32, i32) {
    %c0_i32 = arith.constant 0 : i32
    %c0_i32_0 = arith.constant 0 : i32
    %c0_i32_1 = arith.constant 0 : i32
    return %arg0, %c0_i32, %c0_i32_0 : i32, i32, i32
  }
  func.func @transform_1(%arg0: i32) -> (i32, i32, i32) {
    %c0_i32 = arith.constant 0 : i32
    %c0_i32_0 = arith.constant 0 : i32
    %c0_i32_1 = arith.constant 0 : i32
    return %arg0, %c0_i32, %c0_i32_0 : i32, i32, i32
  }
}

module attributes {stable_mosaic.version = 11 : i64} {
  func.func @_linear_kernel(%arg0: i32, %arg1: i32, %arg2: i32, %arg3: memref<16x32xf32, #tpu.memory_space<vmem>>, %arg4: memref<32x96xf32, #tpu.memory_space<vmem>>, %arg5: memref<1x96xf32, #tpu.memory_space<vmem>>, %arg6: memref<16x96xf32, #tpu.memory_space<vmem>>, %arg7: memref<16x96xf32, #tpu.memory_space<vmem>>) attributes {dimension_semantics = [#tpu.dimension_semantics<parallel>, #tpu.dimension_semantics<parallel>, #tpu.dimension_semantics<arbitrary>], iteration_bounds = array<i64: 1, 1, 1>, scalar_prefetch = 0 : i64, scratch_operands = 1 : i64, tpu.core_type = #tpu.core_type<tc>, window_params = [{transform_indices = @transform_0, window_bounds = array<i64: 16, 32>}, {transform_indices = @transform_1, window_bounds = array<i64: 32, 96>}, {transform_indices = @transform_2, window_bounds = array<i64: 1, 96>}, {transform_indices = @transform_3, window_bounds = array<i64: 16, 96>}]} {
    %c0_i32 = arith.constant 0 : i32
    %0 = arith.cmpi eq, %arg2, %c0_i32 : i32
    %1 = arith.extui %0 : i1 to i32
    %c0_i32_0 = arith.constant 0 : i32
    %2 = arith.cmpi ne, %1, %c0_i32_0 : i32
    scf.if %2 {
      %cst_10 = arith.constant 0.000000e+00 : f32
      %12 = vector.broadcast %cst_10 : f32 to vector<16x96xf32>
      %c0_11 = arith.constant 0 : index
      %c0_12 = arith.constant 0 : index
      %13 = vector.load %arg7[%c0_11, %c0_12] : memref<16x96xf32, #tpu.memory_space<vmem>>, vector<16x96xf32>
      tpu.vector_store %arg7[%c0_11, %c0_12], %12 {strides = array<i32>} : memref<16x96xf32, #tpu.memory_space<vmem>>, vector<16x96xf32>,
    } else {
    }
    %c0 = arith.constant 0 : index
    %c0_1 = arith.constant 0 : index
    %3 = vector.load %arg7[%c0, %c0_1] : memref<16x96xf32, #tpu.memory_space<vmem>>, vector<16x96xf32>
    %c0_2 = arith.constant 0 : index
    %c0_3 = arith.constant 0 : index
    %4 = vector.load %arg3[%c0_2, %c0_3] : memref<16x32xf32, #tpu.memory_space<vmem>>, vector<16x32xf32>
    %c0_4 = arith.constant 0 : index
    %c0_5 = arith.constant 0 : index
    %5 = vector.load %arg4[%c0_4, %c0_5] : memref<32x96xf32, #tpu.memory_space<vmem>>, vector<32x96xf32>
    %cst = arith.constant dense<0.000000e+00> : vector<16x96xf32>
    %6 = tpu.matmul %4, %5, %cst {dimension_numbers = #tpu.dot_dimension_numbers<[1], [0], [0], [1], [0, 0, 1, 1], [], []>} : vector<16x32xf32>, vector<32x96xf32>, vector<16x96xf32> -> vector<16x96xf32>
    %7 = arith.addf %3, %6 : vector<16x96xf32>
    %c0_6 = arith.constant 0 : index
    %c0_7 = arith.constant 0 : index
    %8 = vector.load %arg7[%c0_6, %c0_7] : memref<16x96xf32, #tpu.memory_space<vmem>>, vector<16x96xf32>
    tpu.vector_store %arg7[%c0_6, %c0_7], %7 {strides = array<i32>} : memref<16x96xf32, #tpu.memory_space<vmem>>, vector<16x96xf32>,
    %c0_i32_8 = arith.constant 0 : i32
    %9 = arith.cmpi eq, %arg2, %c0_i32_8 : i32
    %10 = arith.extui %9 : i1 to i32
    %c0_i32_9 = arith.constant 0 : i32
    %11 = arith.cmpi ne, %10, %c0_i32_9 : i32
    scf.if %11 {
      %c0_10 = arith.constant 0 : index
      %c0_11 = arith.constant 0 : index
      %12 = vector.load %arg7[%c0_10, %c0_11] : memref<16x96xf32, #tpu.memory_space<vmem>>, vector<16x96xf32>
      %c0_12 = arith.constant 0 : index
      %c0_13 = arith.constant 0 : index
      %13 = vector.load %arg5[%c0_12, %c0_13] : memref<1x96xf32, #tpu.memory_space<vmem>>, vector<1x96xf32>
      %14 = vector.broadcast %13 : vector<1x96xf32> to vector<16x96xf32>
      %15 = arith.addf %12, %14 : vector<16x96xf32>
      %c0_14 = arith.constant 0 : index
      %c0_15 = arith.constant 0 : index
      %16 = vector.load %arg6[%c0_14, %c0_15] : memref<16x96xf32, #tpu.memory_space<vmem>>, vector<16x96xf32>
      tpu.vector_store %arg6[%c0_14, %c0_15], %15 {strides = array<i32>} : memref<16x96xf32, #tpu.memory_space<vmem>>, vector<16x96xf32>,
    } else {
    }
    return
  }
  func.func @transform_0(%arg0: i32, %arg1: i32, %arg2: i32) -> (i32, i32) {
    %c0_i32 = arith.constant 0 : i32
    return %arg0, %arg2 : i32, i32
  }
  func.func @transform_1(%arg0: i32, %arg1: i32, %arg2: i32) -> (i32, i32) {
    %c0_i32 = arith.constant 0 : i32
    return %arg2, %arg1 : i32, i32
  }
  func.func @transform_2(%arg0: i32, %arg1: i32, %arg2: i32) -> (i32, i32) {
    %c0_i32 = arith.constant 0 : i32
    %c0_i32_0 = arith.constant 0 : i32
    return %c0_i32, %arg1 : i32, i32
  }
  func.func @transform_3(%arg0: i32, %arg1: i32, %arg2: i32) -> (i32, i32) {
    %c0_i32 = arith.constant 0 : i32
    return %arg0, %arg1 : i32, i32
  }
}

</mosaic_0001>

<llo_original>
// kernel: attention_forward.5
$region0: #{attention_forward.5}
  #allocation0 [shape = 'u32[]', space=smem, size = 0x4, offset = 0x4, fixed_abs, tag = 'smem constant byte address 0x4 - core index']
  #allocation1 [shape = 'u32[72,128]{1,0:T(1,128)}', space=vmem, size = 0x9000, scoped, tag = 'internal scratch']
  #allocation2 [shape = 'f32[16,32]{1,0:T(8,128)}', space=vmem, size = 0x2000, scoped, tag = 'scratch operand']
  %s0 = inlined_call_operand.vmem [shape: f32[16,32], index: 0, kind: input, shape index: {}]
  %s1 = inlined_call_operand.hbm [shape: f32[32,32], index: 1, kind: input, shape index: {}]
  %s2 = inlined_call_operand.vmem [shape: f32[1,32], index: 2, kind: input, shape index: {}]
  %s3 = inlined_call_operand.hbm [shape: f32[16,32], index: 3, kind: output, shape index: {}]
  %s4 = sld [smem:[#allocation0]]
  $region34: #{attention_forward.5} parent=0
    _
  %s6 = ssub.s32 1, %s4
  %s7 = scalar_select 0, %s6, %s4
  $region1: #{attention_forward.5} parent=0
    #allocation3 [shape = 'u8[16384]{0}', space=vmem, size = 0x4000, scoped, tag = 'input window, operand 1, single buffered']
    #allocation4 [shape = 's32[1]{0}', space=sflag, size = 0x4, scoped, tag = 'scoped memory for attention_forward.5']
    #allocation5 [shape = 's32[1]{0}', space=sflag, size = 0x4, scoped, tag = 'scoped memory for attention_forward.5']
    #allocation6 [shape = 'u8[8192]{0}', space=vmem, size = 0x2000, scoped, tag = 'output window, operand 0, single buffered']
    %8 = vsyncpa [#allocation4], 0
    %9 = vsyncpa [#allocation5], 0
    // Predicated region
    $region2: #{attention_forward.5} parent=1 // pred_check
      _
    $region3: #{attention_forward.5} parent=1 // pred_check_branch
      %11 = sbr.rel (0) target = $region5
    $region4: #{attention_forward.5} parent=1 // pred_region
      _
    $region5: #{attention_forward.5} parent=1 // pred_fallthru
      _
    // Predicated region
    $region6: #{attention_forward.5} parent=1 // pred_check
      _
    $region7: #{attention_forward.5} parent=1 // pred_check_branch
      %13 = sbr.rel (0) target = $region9
    $region8: #{attention_forward.5} parent=1 // pred_region
      %15 = vsyncadd [#allocation4], 0
      %s16 = sshll.u32 %s1, 4
      %s17 = int_to_ptr.hbm [resolvable:$true] %s16
      %s18 = sshll.u32 [#allocation3], 4
      %s19 = int_to_ptr.vmem [resolvable:$true] %s18
      %24 = dma.hbm_to_vmem [thread:$0]  %s17, 512, %s19, [#allocation4], 128, 128, 8
    $region9: #{attention_forward.5} parent=1 // pred_fallthru
      _
    // Predicated region
    $region10: #{attention_forward.5} parent=1 // pred_check
      _
    $region11: #{attention_forward.5} parent=1 // pred_check_branch
      %26 = sbr.rel (0) target = $region13
    $region12: #{attention_forward.5} parent=1 // pred_region
      _
    $region13: #{attention_forward.5} parent=1 // pred_fallthru
      _
    // Predicated region
    $region14: #{attention_forward.5} parent=1 // pred_check
      _
    $region15: #{attention_forward.5} parent=1 // pred_check_branch
      %28 = sbr.rel (0) target = $region17
    $region16: #{attention_forward.5} parent=1 // pred_region
      %30 = dma.done [#allocation4], 512
    $region17: #{attention_forward.5} parent=1 // pred_fallthru
      _
    %p31 = scmp.eq.s32.totalorder 0, 0
    // Predicated region
    $region18: #{attention_forward.5} parent=1 // pred_check
      %p32 = pneg %p31
    $region19: #{attention_forward.5} parent=1 // pred_check_branch
      %34 = sbr.rel (%p32) target = $region21
    $region20: #{attention_forward.5} parent=1 // pred_region
      %vm35 = vcmask 261120
      %36 = vst.msk [vmem:[#allocation2] sm:$0xff] %vm35, 0.0
      %37 = vst.msk [vmem:[#allocation2 + $0x8] sm:$0xff] %vm35, 0.0
    $region21: #{attention_forward.5} parent=1 // pred_fallthru
      _
    %v38 = vld [vmem:[#allocation2] sm:$0xff]
    %v39 = vld [vmem:[#allocation2 + $0x8] sm:$0xff]
    %v40 = vld [vmem:[%s0] sm:$0xff]
    %v41 = vld [vmem:[%s0 + $0x8] sm:$0xff]
    %v42 = vld [vmem:[#allocation3] sm:$0xff]
    %v43 = vld [vmem:[#allocation3 + $0x8] sm:$0xff]
    %v44 = vld [vmem:[#allocation3 + $0x10] sm:$0xff]
    %v45 = vld [vmem:[#allocation3 + $0x18] sm:$0xff]
    %vm46 = vcmask 261120
    %v48 = vsel %vm46, %v40, 0
    %v51 = vsel %vm46, %v41, 0
    %53 = vmatpush.msra.mxu0 0.0
    %54 = vmatpush.msra.mxu0 0.0
    %55 = vmatpush.msra.mxu0 0.0
    %56 = vmatpush.msra.mxu0 0.0
    %57 = vmatpush.msra.mxu0 0.0
    %58 = vmatpush.msra.mxu0 0.0
    %59 = vmatpush.msra.mxu0 0.0
    %60 = vmatpush.msra.mxu0 0.0
    %61 = vmatpush.msra.mxu0 0.0
    %62 = vmatpush.msra.mxu0 0.0
    %63 = vmatpush.msra.mxu0 0.0
    %64 = vmatpush.msra.mxu0 0.0
    %65 = vmatpush.msra.mxu0 %v45
    %66 = vmatpush.msra.mxu0 %v44
    %67 = vmatpush.msra.mxu0 %v43
    %68 = vmatpush.msra.mxu0 %v42
    %69 = vmatmul.f32.gmra.mxu0 %v48
    %v70 = vpop.f32.mrf.mxu0
    %v71 = vadd.f32 0.0, %v70
    %72 = vmatmul.f32.gmra.mxu0 %v51
    %v73 = vpop.f32.mrf.mxu0
    %v74 = vadd.f32 0.0, %v73
    %75 = vdwg.mxu0
    %v76 = vadd.f32 %v38, %v71
    %v77 = vadd.f32 %v39, %v74
    %78 = vst.msk [vmem:[#allocation2] sm:$0xff] %vm46, %v76
    %79 = vst.msk [vmem:[#allocation2 + $0x8] sm:$0xff] %vm46, %v77
    // Predicated region
    $region22: #{attention_forward.5} parent=1 // pred_check
      %p80 = pneg %p31
    $region23: #{attention_forward.5} parent=1 // pred_check_branch
      %82 = sbr.rel (%p80) target = $region25
    $region24: #{attention_forward.5} parent=1 // pred_region
      %v83 = vld [vmem:[#allocation2] sm:$0xff]
      %v84 = vld [vmem:[#allocation2 + $0x8] sm:$0xff]
      %v85 = vld [vmem:[%s2] sm:$0x1]
      %v87 = vperm.slane %v85, 0
      %v89 = vadd.f32 %v83, %v87
      %v90 = vadd.f32 %v84, %v87
      %91 = vst.msk [vmem:[#allocation6] sm:$0xff] %vm46, %v89
      %92 = vst.msk [vmem:[#allocation6 + $0x8] sm:$0xff] %vm46, %v90
    $region25: #{attention_forward.5} parent=1 // pred_fallthru
      _
    // Predicated region
    $region26: #{attention_forward.5} parent=1 // pred_check
      _
    $region27: #{attention_forward.5} parent=1 // pred_check_branch
      %94 = sbr.rel (0) target = $region29
    $region28: #{attention_forward.5} parent=1 // pred_region
      %96 = vsyncadd [#allocation5], 0
      %s97 = sshll.u32 [#allocation6], 4
      %s98 = int_to_ptr.vmem [resolvable:$true] %s97
      %s99 = sshll.u32 %s3, 4
      %s100 = int_to_ptr.hbm [resolvable:$true] %s99
      %105 = dma.vmem_to_hbm [thread:$0]  %s98, 256, %s100, [#allocation5], 128, 128, 8
    $region29: #{attention_forward.5} parent=1 // pred_fallthru
      _
    // Predicated region
    $region30: #{attention_forward.5} parent=1 // pred_check
      _
    $region31: #{attention_forward.5} parent=1 // pred_check_branch
      %107 = sbr.rel (0) target = $region33
    $region32: #{attention_forward.5} parent=1 // pred_region
      %109 = dma.done [#allocation5], 256
    $region33: #{attention_forward.5} parent=1 // pred_fallthru
      _
    %110 = vsyncpa [#allocation4], 1
    %111 = vsyncpa [#allocation5], 1

// kernel: attention_forward.3
$region0: #{attention_forward.3}
  #allocation0 [shape = 'u32[]', space=smem, size = 0x4, offset = 0x4, fixed_abs, tag = 'smem constant byte address 0x4 - core index']
  #allocation1 [shape = 'u32[72,128]{1,0:T(1,128)}', space=vmem, size = 0x9000, scoped, tag = 'internal scratch']
  #allocation2 [shape = 'f32[16,96]{1,0:T(8,128)}', space=vmem, size = 0x2000, scoped, tag = 'scratch operand']
  %s0 = inlined_call_operand.hbm [shape: f32[16,32], index: 0, kind: input, shape index: {}]
  %s1 = inlined_call_operand.hbm [shape: f32[32,96], index: 1, kind: input, shape index: {}]
  %s2 = inlined_call_operand.vmem [shape: f32[1,96], index: 2, kind: input, shape index: {}]
  %s3 = inlined_call_operand.vmem [shape: f32[16,96], index: 3, kind: output, shape index: {}]
  %s4 = sld [smem:[#allocation0]]
  $region38: #{attention_forward.3} parent=0
    _
  %s6 = ssub.s32 1, %s4
  %s7 = scalar_select 0, %s6, %s4
  $region1: #{attention_forward.3} parent=0
    #allocation3 [shape = 'u8[8192]{0}', space=vmem, size = 0x2000, scoped, tag = 'input window, operand 0, single buffered']
    #allocation4 [shape = 's32[1]{0}', space=sflag, size = 0x4, scoped, tag = 'scoped memory for attention_forward.3']
    #allocation5 [shape = 'u8[16384]{0}', space=vmem, size = 0x4000, scoped, tag = 'input window, operand 1, single buffered']
    #allocation6 [shape = 's32[1]{0}', space=sflag, size = 0x4, scoped, tag = 'scoped memory for attention_forward.3']
    %8 = vsyncpa [#allocation4], 0
    %9 = vsyncpa [#allocation6], 0
    // Predicated region
    $region2: #{attention_forward.3} parent=1 // pred_check
      _
    $region3: #{attention_forward.3} parent=1 // pred_check_branch
      %11 = sbr.rel (0) target = $region5
    $region4: #{attention_forward.3} parent=1 // pred_region
      %13 = vsyncadd [#allocation4], 0
      %s14 = sshll.u32 %s0, 4
      %s15 = int_to_ptr.hbm [resolvable:$true] %s14
      %s16 = sshll.u32 [#allocation3], 4
      %s17 = int_to_ptr.vmem [resolvable:$true] %s16
      %22 = dma.hbm_to_vmem [thread:$0]  %s15, 256, %s17, [#allocation4], 128, 128, 8
    $region5: #{attention_forward.3} parent=1 // pred_fallthru
      _
    // Predicated region
    $region6: #{attention_forward.3} parent=1 // pred_check
      _
    $region7: #{attention_forward.3} parent=1 // pred_check_branch
      %24 = sbr.rel (0) target = $region9
    $region8: #{attention_forward.3} parent=1 // pred_region
      %26 = vsyncadd [#allocation6], 0
      %s27 = sshll.u32 %s1, 4
      %s28 = int_to_ptr.hbm [resolvable:$true] %s27
      %s29 = sshll.u32 [#allocation5], 4
      %s30 = int_to_ptr.vmem [resolvable:$true] %s29
      %35 = dma.hbm_to_vmem [thread:$0]  %s28, 512, %s30, [#allocation6], 128, 128, 8
    $region9: #{attention_forward.3} parent=1 // pred_fallthru
      _
    // Predicated region
    $region10: #{attention_forward.3} parent=1 // pred_check
      _
    $region11: #{attention_forward.3} parent=1 // pred_check_branch
      %37 = sbr.rel (0) target = $region13
    $region12: #{attention_forward.3} parent=1 // pred_region
      _
    $region13: #{attention_forward.3} parent=1 // pred_fallthru
      _
    // Predicated region
    $region14: #{attention_forward.3} parent=1 // pred_check
      _
    $region15: #{attention_forward.3} parent=1 // pred_check_branch
      %39 = sbr.rel (0) target = $region17
    $region16: #{attention_forward.3} parent=1 // pred_region
      %41 = dma.done [#allocation4], 256
    $region17: #{attention_forward.3} parent=1 // pred_fallthru
      _
    // Predicated region
    $region18: #{attention_forward.3} parent=1 // pred_check
      _
    $region19: #{attention_forward.3} parent=1 // pred_check_branch
      %43 = sbr.rel (0) target = $region21
    $region20: #{attention_forward.3} parent=1 // pred_region
      %45 = dma.done [#allocation6], 512
    $region21: #{attention_forward.3} parent=1 // pred_fallthru
      _
    %p46 = scmp.eq.s32.totalorder 0, 0
    // Predicated region
    $region22: #{attention_forward.3} parent=1 // pred_check
      %p47 = pneg %p46
    $region23: #{attention_forward.3} parent=1 // pred_check_branch
      %49 = sbr.rel (%p47) target = $region25
    $region24: #{attention_forward.3} parent=1 // pred_region
      %vm50 = vcmask 785408
      %51 = vst.msk [vmem:[#allocation2] sm:$0xff] %vm50, 0.0
      %52 = vst.msk [vmem:[#allocation2 + $0x8] sm:$0xff] %vm50, 0.0
    $region25: #{attention_forward.3} parent=1 // pred_fallthru
      _
    %v53 = vld [vmem:[#allocation2] sm:$0xff]
    %v54 = vld [vmem:[#allocation2 + $0x8] sm:$0xff]
    %v55 = vld [vmem:[#allocation3] sm:$0xff]
    %v56 = vld [vmem:[#allocation3 + $0x8] sm:$0xff]
    %v57 = vld [vmem:[#allocation5] sm:$0xff]
    %v58 = vld [vmem:[#allocation5 + $0x8] sm:$0xff]
    %v59 = vld [vmem:[#allocation5 + $0x10] sm:$0xff]
    %v60 = vld [vmem:[#allocation5 + $0x18] sm:$0xff]
    %vm61 = vcmask 261120
    %v63 = vsel %vm61, %v55, 0
    %v66 = vsel %vm61, %v56, 0
    %68 = vmatpush.msra.mxu0 0.0
    %69 = vmatpush.msra.mxu0 0.0
    %70 = vmatpush.msra.mxu0 0.0
    %71 = vmatpush.msra.mxu0 0.0
    %72 = vmatpush.msra.mxu0 0.0
    %73 = vmatpush.msra.mxu0 0.0
    %74 = vmatpush.msra.mxu0 0.0
    %75 = vmatpush.msra.mxu0 0.0
    %76 = vmatpush.msra.mxu0 0.0
    %77 = vmatpush.msra.mxu0 0.0
    %78 = vmatpush.msra.mxu0 0.0
    %79 = vmatpush.msra.mxu0 0.0
    %80 = vmatpush.msra.mxu0 %v60
    %81 = vmatpush.msra.mxu0 %v59
    %82 = vmatpush.msra.mxu0 %v58
    %83 = vmatpush.msra.mxu0 %v57
    %84 = vmatmul.f32.gmra.mxu0 %v63
    %v85 = vpop.f32.mrf.mxu0
    %v86 = vadd.f32 0.0, %v85
    %87 = vmatmul.f32.gmra.mxu0 %v66
    %v88 = vpop.f32.mrf.mxu0
    %v89 = vadd.f32 0.0, %v88
    %90 = vdwg.mxu0
    %v91 = vadd.f32 %v53, %v86
    %v92 = vadd.f32 %v54, %v89
    %vm93 = vcmask 785408
    %94 = vst.msk [vmem:[#allocation2] sm:$0xff] %vm93, %v91
    %95 = vst.msk [vmem:[#allocation2 + $0x8] sm:$0xff] %vm93, %v92
    // Predicated region
    $region26: #{attention_forward.3} parent=1 // pred_check
      %p96 = pneg %p46
    $region27: #{attention_forward.3} parent=1 // pred_check_branch
      %98 = sbr.rel (%p96) target = $region29
    $region28: #{attention_forward.3} parent=1 // pred_region
      %v99 = vld [vmem:[#allocation2] sm:$0xff]
      %v100 = vld [vmem:[#allocation2 + $0x8] sm:$0xff]
      %v101 = vld [vmem:[%s2] sm:$0x1]
      %v103 = vperm.slane %v101, 0
      %v105 = vadd.f32 %v99, %v103
      %v106 = vadd.f32 %v100, %v103
      %107 = vst.msk [vmem:[%s3] sm:$0xff] %vm93, %v105
      %108 = vst.msk [vmem:[%s3 + $0x8] sm:$0xff] %vm93, %v106
    $region29: #{attention_forward.3} parent=1 // pred_fallthru
      _
    // Predicated region
    $region30: #{attention_forward.3} parent=1 // pred_check
      _
    $region31: #{attention_forward.3} parent=1 // pred_check_branch
      %110 = sbr.rel (0) target = $region33
    $region32: #{attention_forward.3} parent=1 // pred_region
      _
    $region33: #{attention_forward.3} parent=1 // pred_fallthru
      _
    // Predicated region
    $region34: #{attention_forward.3} parent=1 // pred_check
      _
    $region35: #{attention_forward.3} parent=1 // pred_check_branch
      %112 = sbr.rel (0) target = $region37
    $region36: #{attention_forward.3} parent=1 // pred_region
      _
    $region37: #{attention_forward.3} parent=1 // pred_fallthru
      _
    %113 = vsyncpa [#allocation4], 1
    %114 = vsyncpa [#allocation6], 1

// kernel: attention_forward.4
$region0: #{attention_forward.4}
  #allocation0 [shape = 'u32[]', space=smem, size = 0x4, offset = 0x4, fixed_abs, tag = 'smem constant byte address 0x4 - core index']
  #allocation1 [shape = 'u32[72,128]{1,0:T(1,128)}', space=vmem, size = 0x9000, scoped, tag = 'internal scratch']
  %s0 = inlined_call_operand.vmem [shape: f32[2,8,96], index: 0, kind: input, shape index: {}]
  %s1 = inlined_call_operand.vmem [shape: f32[2,8,32], index: 1, kind: output, shape index: {}]
  %s2 = sld [smem:[#allocation0]]
  $region37: #{attention_forward.4} parent=0
    _
  %s4 = ssub.s32 1, %s2
  %s5 = scalar_select 0, %s4, %s2
  loop: start=0, step=1, limit=4
  $region2: #{attention_forward.4} parent=0 // loop_pre_header
    _
  $region3: #{attention_forward.4} parent=0 // loop_header
    %s7 = sphi 0, %s11
    %p8 = scmp.ge.s32.totalorder %s7, 4
    %s17 = sphi 0, %s19
    %s20 = sphi 0, %s17
    %s21 = sphi 0, %s20
    %s37 = sphi 0, %s21
    %s43 = sphi 0, %s45
    %s46 = sphi 0, %s43
    %s47 = sphi 0, %s46
    %s63 = sphi 0, %s47
  $region4: #{attention_forward.4} parent=0 // loop_header_branch
    %10 = sbr.rel (%p8) target = $region8
  $region5: #{attention_forward.4} parent=0 // loop_body
    %s12 = ssub.s32 %s7, 1
    %s13 = ssub.s32 %s7, 2
    %s14 = sadd.s32 %s7, 1
    %s15 = ssub.s32 %s7, %s14
    %p16 = scmp.eq.s32.totalorder %s15, 0
    %s18 = sadd.s32 %s17, 1
    %s19 = scalar_select %p16, %s17, %s18
    %p22 = pneg %p16
    %p23 = scmp.eq.s32.totalorder %s7, 1
    %p24 = por %p22, %p23
    %p25 = scmp.ne.s32.totalorder %s17, %s20
    %p26 = scmp.eq.s32.totalorder %s7, 0
    %p27 = por %p25, %p26
    %p28 = scmp.ne.s32.totalorder %s17, %s20
    %p29 = scmp.eq.s32.totalorder %s12, 1
    %p30 = por %p28, %p29
    %p31 = scmp.ne.s32.totalorder %s20, %s21
    %p32 = scmp.eq.s32.totalorder %s12, 0
    %p33 = por %p31, %p32
    %p34 = scmp.ne.s32.totalorder %s20, %s21
    %p35 = scmp.eq.s32.totalorder %s13, 1
    %p36 = por %p34, %p35
    %p38 = scmp.ne.s32.totalorder %s21, %s37
    %p39 = scmp.eq.s32.totalorder %s13, 0
    %p40 = por %p38, %p39
    %s41 = ssub.s32 %s7, %s14
    %p42 = scmp.eq.s32.totalorder %s41, 0
    %s44 = sadd.s32 %s43, 1
    %s45 = scalar_select %p42, %s43, %s44
    %p48 = pneg %p42
    %p49 = scmp.eq.s32.totalorder %s7, 1
    %p50 = por %p48, %p49
    %p51 = scmp.ne.s32.totalorder %s43, %s46
    %p52 = scmp.eq.s32.totalorder %s7, 0
    %p53 = por %p51, %p52
    %p54 = scmp.ne.s32.totalorder %s43, %s46
    %p55 = scmp.eq.s32.totalorder %s12, 1
    %p56 = por %p54, %p55
    %p57 = scmp.ne.s32.totalorder %s46, %s47
    %p58 = scmp.eq.s32.totalorder %s12, 0
    %p59 = por %p57, %p58
    %p60 = scmp.ne.s32.totalorder %s46, %s47
    %p61 = scmp.eq.s32.totalorder %s13, 1
    %p62 = por %p60, %p61
    %p64 = scmp.ne.s32.totalorder %s47, %s63
    %p65 = scmp.eq.s32.totalorder %s13, 0
    %p66 = por %p64, %p65
    %p67 = scmp.le.s32.totalorder 1, %s7
    %p68 = scmp.lt.s32.totalorder %s7, 3
    %p69 = pnand %p67, %p68
    %p70 = pneg %p69
    // Predicated region
    $region9: #{attention_forward.4} parent=5 // pred_check
      _
    $region10: #{attention_forward.4} parent=5 // pred_check_branch
      %72 = sbr.rel (%p69) target = $region12
    $region11: #{attention_forward.4} parent=5 // pred_region
      %s73 = ssub.s32 %s7, 1
    $region12: #{attention_forward.4} parent=5 // pred_fallthru
      _
    %p74 = scmp.lt.s32.totalorder %s7, 2
    // Predicated region
    $region13: #{attention_forward.4} parent=5 // pred_check
      %p75 = pneg %p74
    $region14: #{attention_forward.4} parent=5 // pred_check_branch
      %77 = sbr.rel (%p75) target = $region16
    $region15: #{attention_forward.4} parent=5 // pred_region
      // Predicated region
      $region17: #{attention_forward.4} parent=15 // pred_check
        %p78 = pneg %p27
      $region18: #{attention_forward.4} parent=15 // pred_check_branch
        %80 = sbr.rel (%p78) target = $region20
      $region19: #{attention_forward.4} parent=15 // pred_region
        %p81 = scmp.lt.s32.totalorder %s7, 1
        %s82 = scalar_select %p81, %s7, 1
        %s83 = smul.addr %s82, 8
        %s84 = scalar_lea.vmem %s0, %s83
      $region20: #{attention_forward.4} parent=15 // pred_fallthru
        _
    $region16: #{attention_forward.4} parent=5 // pred_fallthru
      _
    %p85 = scmp.le.s32.totalorder 1, %s7
    %p86 = scmp.lt.s32.totalorder %s7, 3
    %p87 = pnand %p85, %p86
    %p88 = pneg %p87
    // Predicated region
    $region21: #{attention_forward.4} parent=5 // pred_check
      _
    $region22: #{attention_forward.4} parent=5 // pred_check_branch
      %90 = sbr.rel (%p87) target = $region24
    $region23: #{attention_forward.4} parent=5 // pred_region
      %s91 = ssub.s32 %s7, 1
      %p92 = scmp.lt.s32.totalorder %s12, 1
      %s93 = scalar_select %p92, %s12, 1
      %s94 = smul.addr %s93, 8
      %s95 = scalar_lea.vmem %s0, %s94
      %p96 = pneg %p33
      %p97 = pneg %p30
      %p98 = pneg %p59
      %p99 = pneg %p56
      %p100 = scmp.lt.s32.totalorder %s12, 1
      %s101 = scalar_select %p100, %s12, 1
      %s102 = smul.addr %s101, 8
      %s103 = scalar_lea.vmem %s1, %s102
      %p104 = scmp.lt.s32.totalorder %s12, 1
      %s105 = scalar_select %p104, %s12, 1
      %s106 = smul.addr %s105, 8
      %s107 = scalar_lea.vmem %s0, %s106
      %p108 = scmp.lt.s32.totalorder %s12, 1
      %s109 = scalar_select %p108, %s12, 1
      %s110 = smul.addr %s109, 8
      %s111 = scalar_lea.vmem %s1, %s110
      %v112 = vld [vmem:[%s107] sm:$0xff]
      %114 = vrot.lane.b32.xlu0 %v112, 96
      %v115 = vpop.permute.xlu0 %114
      %vm116 = vcmask 31744
      %v117 = vsel %vm116, %v112, 0
      %v119 = vsel %vm116, %v115, 0
      %121 = vmatpush.xpose.msra.mxu0 0.0
      %122 = vmatpush.xpose.msra.mxu0 0.0
      %123 = vmatpush.xpose.msra.mxu0 0.0
      %124 = vmatpush.xpose.msra.mxu0 0.0
      %125 = vmatpush.xpose.msra.mxu0 0.0
      %126 = vmatpush.xpose.msra.mxu0 0.0
      %127 = vmatpush.xpose.msra.mxu0 0.0
      %128 = vmatpush.xpose.msra.mxu0 0.0
      %129 = vmatpush.xpose.msra.mxu0 0.0
      %130 = vmatpush.xpose.msra.mxu0 0.0
      %131 = vmatpush.xpose.msra.mxu0 0.0
      %132 = vmatpush.xpose.msra.mxu0 0.0
      %133 = vmatpush.xpose.msra.mxu0 0.0
      %134 = vmatpush.xpose.msra.mxu0 0.0
      %135 = vmatpush.xpose.msra.mxu0 0.0
      %136 = vmatpush.xpose.msra.mxu0 %v119
      %137 = vmatmul.f32.gmra.mxu0 %v117
      %v138 = vpop.f32.mrf.mxu0
      %v139 = vadd.f32 0.0, %v138
      %140 = vdwg.mxu0
      %vm141 = vcmask 64512
      %v142 = vsel %vm141, %v139, -inf
      %143 = vmax.xlane.f32.xlu0 %v142
      %v144 = vpop.xlane.xlu0 %143
      %v145 = vsub.f32 %v139, %v144
      %v146 = vmul.f32 %v145, 1.442695
      %v147 = vpow.pop %v146
      %v148 = vsel %vm141, %v147, 0.0
      %149 = vadd.xlane.f32.xlu0 %v148
      %v150 = vpop.xlane.xlu0 %149
      %151 = vrot.lane.b32.xlu0 %v112, 64
      %v152 = vpop.permute.xlu0 %151
      %v155 = vsel %vm141, %v147, 0
      %157 = vmatpush.msra.mxu0 0.0
      %158 = vmatpush.msra.mxu0 0.0
      %159 = vmatpush.msra.mxu0 0.0
      %160 = vmatpush.msra.mxu0 0.0
      %161 = vmatpush.msra.mxu0 0.0
      %162 = vmatpush.msra.mxu0 0.0
      %163 = vmatpush.msra.mxu0 0.0
      %164 = vmatpush.msra.mxu0 0.0
      %165 = vmatpush.msra.mxu0 0.0
      %166 = vmatpush.msra.mxu0 0.0
      %167 = vmatpush.msra.mxu0 0.0
      %168 = vmatpush.msra.mxu0 0.0
      %169 = vmatpush.msra.mxu0 0.0
      %170 = vmatpush.msra.mxu0 0.0
      %171 = vmatpush.msra.mxu0 0.0
      %172 = vmatpush.msra.mxu0 %v152
      %173 = vmatmul.f32.gmra.mxu0 %v155
      %v174 = vpop.f32.mrf.mxu0
      %v175 = vadd.f32 0.0, %v174
      %176 = vdwg.mxu0
      %v177 = vrcp.pop %v150
      %v178 = vmul.f32 %v175, %v177
      %179 = vrot.lane.b32.xlu0 %v112, 124
      %v180 = vpop.permute.xlu0 %179
      %181 = vrot.lane.b32.xlu0 %v112, 92
      %v182 = vpop.permute.xlu0 %181
      %v183 = vsel %vm116, %v180, 0
      %v185 = vsel %vm116, %v182, 0
      %187 = vmatpush.xpose.msra.mxu0 0.0
      %188 = vmatpush.xpose.msra.mxu0 0.0
      %189 = vmatpush.xpose.msra.mxu0 0.0
      %190 = vmatpush.xpose.msra.mxu0 0.0
      %191 = vmatpush.xpose.msra.mxu0 0.0
      %192 = vmatpush.xpose.msra.mxu0 0.0
      %193 = vmatpush.xpose.msra.mxu0 0.0
      %194 = vmatpush.xpose.msra.mxu0 0.0
      %195 = vmatpush.xpose.msra.mxu0 0.0
      %196 = vmatpush.xpose.msra.mxu0 0.0
      %197 = vmatpush.xpose.msra.mxu0 0.0
      %198 = vmatpush.xpose.msra.mxu0 0.0
      %199 = vmatpush.xpose.msra.mxu0 0.0
      %200 = vmatpush.xpose.msra.mxu0 0.0
      %201 = vmatpush.xpose.msra.mxu0 0.0
      %202 = vmatpush.xpose.msra.mxu0 %v185
      %203 = vmatmul.f32.gmra.mxu0 %v183
      %v204 = vpop.f32.mrf.mxu0
      %v205 = vadd.f32 0.0, %v204
      %206 = vdwg.mxu0
      %v207 = vsel %vm141, %v205, -inf
      %208 = vmax.xlane.f32.xlu0 %v207
      %v209 = vpop.xlane.xlu0 %208
      %v210 = vsub.f32 %v205, %v209
      %v211 = vmul.f32 %v210, 1.442695
      %v212 = vpow.pop %v211
      %v213 = vsel %vm141, %v212, 0.0
      %214 = vadd.xlane.f32.xlu0 %v213
      %v215 = vpop.xlane.xlu0 %214
      %216 = vrot.lane.b32.xlu0 %v112, 60
      %v217 = vpop.permute.xlu0 %216
      %v220 = vsel %vm141, %v212, 0
      %222 = vmatpush.msra.mxu0 0.0
      %223 = vmatpush.msra.mxu0 0.0
      %224 = vmatpush.msra.mxu0 0.0
      %225 = vmatpush.msra.mxu0 0.0
      %226 = vmatpush.msra.mxu0 0.0
      %227 = vmatpush.msra.mxu0 0.0
      %228 = vmatpush.msra.mxu0 0.0
      %229 = vmatpush.msra.mxu0 0.0
      %230 = vmatpush.msra.mxu0 0.0
      %231 = vmatpush.msra.mxu0 0.0
      %232 = vmatpush.msra.mxu0 0.0
      %233 = vmatpush.msra.mxu0 0.0
      %234 = vmatpush.msra.mxu0 0.0
      %235 = vmatpush.msra.mxu0 0.0
      %236 = vmatpush.msra.mxu0 0.0
      %237 = vmatpush.msra.mxu0 %v217
      %238 = vmatmul.f32.gmra.mxu0 %v220
      %v239 = vpop.f32.mrf.mxu0
      %v240 = vadd.f32 0.0, %v239
      %241 = vdwg.mxu0
      %v242 = vrcp.pop %v215
      %v243 = vmul.f32 %v240, %v242
      %244 = vrot.lane.b32.xlu0 %v112, 120
      %v245 = vpop.permute.xlu0 %244
      %246 = vrot.lane.b32.xlu0 %v112, 88
      %v247 = vpop.permute.xlu0 %246
      %v248 = vsel %vm116, %v245, 0
      %v250 = vsel %vm116, %v247, 0
      %252 = vmatpush.xpose.msra.mxu0 0.0
      %253 = vmatpush.xpose.msra.mxu0 0.0
      %254 = vmatpush.xpose.msra.mxu0 0.0
      %255 = vmatpush.xpose.msra.mxu0 0.0
      %256 = vmatpush.xpose.msra.mxu0 0.0
      %257 = vmatpush.xpose.msra.mxu0 0.0
      %258 = vmatpush.xpose.msra.mxu0 0.0
      %259 = vmatpush.xpose.msra.mxu0 0.0
      %260 = vmatpush.xpose.msra.mxu0 0.0
      %261 = vmatpush.xpose.msra.mxu0 0.0
      %262 = vmatpush.xpose.msra.mxu0 0.0
      %263 = vmatpush.xpose.msra.mxu0 0.0
      %264 = vmatpush.xpose.msra.mxu0 0.0
      %265 = vmatpush.xpose.msra.mxu0 0.0
      %266 = vmatpush.xpose.msra.mxu0 0.0
      %267 = vmatpush.xpose.msra.mxu0 %v250
      %268 = vmatmul.f32.gmra.mxu0 %v248
      %v269 = vpop.f32.mrf.mxu0
      %v270 = vadd.f32 0.0, %v269
      %271 = vdwg.mxu0
      %v272 = vsel %vm141, %v270, -inf
      %273 = vmax.xlane.f32.xlu0 %v272
      %v274 = vpop.xlane.xlu0 %273
      %v275 = vsub.f32 %v270, %v274
      %v276 = vmul.f32 %v275, 1.442695
      %v277 = vpow.pop %v276
      %v278 = vsel %vm141, %v277, 0.0
      %279 = vadd.xlane.f32.xlu0 %v278
      %v280 = vpop.xlane.xlu0 %279
      %281 = vrot.lane.b32.xlu0 %v112, 56
      %v282 = vpop.permute.xlu0 %281
      %v285 = vsel %vm141, %v277, 0
      %287 = vmatpush.msra.mxu0 0.0
      %288 = vmatpush.msra.mxu0 0.0
      %289 = vmatpush.msra.mxu0 0.0
      %290 = vmatpush.msra.mxu0 0.0
      %291 = vmatpush.msra.mxu0 0.0
      %292 = vmatpush.msra.mxu0 0.0
      %293 = vmatpush.msra.mxu0 0.0
      %294 = vmatpush.msra.mxu0 0.0
      %295 = vmatpush.msra.mxu0 0.0
      %296 = vmatpush.msra.mxu0 0.0
      %297 = vmatpush.msra.mxu0 0.0
      %298 = vmatpush.msra.mxu0 0.0
      %299 = vmatpush.msra.mxu0 0.0
      %300 = vmatpush.msra.mxu0 0.0
      %301 = vmatpush.msra.mxu0 0.0
      %302 = vmatpush.msra.mxu0 %v282
      %303 = vmatmul.f32.gmra.mxu0 %v285
      %v304 = vpop.f32.mrf.mxu0
      %v305 = vadd.f32 0.0, %v304
      %306 = vdwg.mxu0
      %v307 = vrcp.pop %v280
      %v308 = vmul.f32 %v305, %v307
      %309 = vrot.lane.b32.xlu0 %v112, 116
      %v310 = vpop.permute.xlu0 %309
      %311 = vrot.lane.b32.xlu0 %v112, 84
      %v312 = vpop.permute.xlu0 %311
      %v313 = vsel %vm116, %v310, 0
      %v315 = vsel %vm116, %v312, 0
      %317 = vmatpush.xpose.msra.mxu0 0.0
      %318 = vmatpush.xpose.msra.mxu0 0.0
      %319 = vmatpush.xpose.msra.mxu0 0.0
      %320 = vmatpush.xpose.msra.mxu0 0.0
      %321 = vmatpush.xpose.msra.mxu0 0.0
      %322 = vmatpush.xpose.msra.mxu0 0.0
      %323 = vmatpush.xpose.msra.mxu0 0.0
      %324 = vmatpush.xpose.msra.mxu0 0.0
      %325 = vmatpush.xpose.msra.mxu0 0.0
      %326 = vmatpush.xpose.msra.mxu0 0.0
      %327 = vmatpush.xpose.msra.mxu0 0.0
      %328 = vmatpush.xpose.msra.mxu0 0.0
      %329 = vmatpush.xpose.msra.mxu0 0.0
      %330 = vmatpush.xpose.msra.mxu0 0.0
      %331 = vmatpush.xpose.msra.mxu0 0.0
      %332 = vmatpush.xpose.msra.mxu0 %v315
      %333 = vmatmul.f32.gmra.mxu0 %v313
      %v334 = vpop.f32.mrf.mxu0
      %v335 = vadd.f32 0.0, %v334
      %336 = vdwg.mxu0
      %v337 = vsel %vm141, %v335, -inf
      %338 = vmax.xlane.f32.xlu0 %v337
      %v339 = vpop.xlane.xlu0 %338
      %v340 = vsub.f32 %v335, %v339
      %v341 = vmul.f32 %v340, 1.442695
      %v342 = vpow.pop %v341
      %v343 = vsel %vm141, %v342, 0.0
      %344 = vadd.xlane.f32.xlu0 %v343
      %v345 = vpop.xlane.xlu0 %344
      %346 = vrot.lane.b32.xlu0 %v112, 52
      %v347 = vpop.permute.xlu0 %346
      %v350 = vsel %vm141, %v342, 0
      %352 = vmatpush.msra.mxu0 0.0
      %353 = vmatpush.msra.mxu0 0.0
      %354 = vmatpush.msra.mxu0 0.0
      %355 = vmatpush.msra.mxu0 0.0
      %356 = vmatpush.msra.mxu0 0.0
      %357 = vmatpush.msra.mxu0 0.0
      %358 = vmatpush.msra.mxu0 0.0
      %359 = vmatpush.msra.mxu0 0.0
      %360 = vmatpush.msra.mxu0 0.0
      %361 = vmatpush.msra.mxu0 0.0
      %362 = vmatpush.msra.mxu0 0.0
      %363 = vmatpush.msra.mxu0 0.0
      %364 = vmatpush.msra.mxu0 0.0
      %365 = vmatpush.msra.mxu0 0.0
      %366 = vmatpush.msra.mxu0 0.0
      %367 = vmatpush.msra.mxu0 %v347
      %368 = vmatmul.f32.gmra.mxu0 %v350
      %v369 = vpop.f32.mrf.mxu0
      %v370 = vadd.f32 0.0, %v369
      %371 = vdwg.mxu0
      %v372 = vrcp.pop %v345
      %v373 = vmul.f32 %v370, %v372
      %374 = vrot.lane.b32.xlu0 %v112, 112
      %v375 = vpop.permute.xlu0 %374
      %376 = vrot.lane.b32.xlu0 %v112, 80
      %v377 = vpop.permute.xlu0 %376
      %v378 = vsel %vm116, %v375, 0
      %v380 = vsel %vm116, %v377, 0
      %382 = vmatpush.xpose.msra.mxu0 0.0
      %383 = vmatpush.xpose.msra.mxu0 0.0
      %384 = vmatpush.xpose.msra.mxu0 0.0
      %385 = vmatpush.xpose.msra.mxu0 0.0
      %386 = vmatpush.xpose.msra.mxu0 0.0
      %387 = vmatpush.xpose.msra.mxu0 0.0
      %388 = vmatpush.xpose.msra.mxu0 0.0
      %389 = vmatpush.xpose.msra.mxu0 0.0
      %390 = vmatpush.xpose.msra.mxu0 0.0
      %391 = vmatpush.xpose.msra.mxu0 0.0
      %392 = vmatpush.xpose.msra.mxu0 0.0
      %393 = vmatpush.xpose.msra.mxu0 0.0
      %394 = vmatpush.xpose.msra.mxu0 0.0
      %395 = vmatpush.xpose.msra.mxu0 0.0
      %396 = vmatpush.xpose.msra.mxu0 0.0
      %397 = vmatpush.xpose.msra.mxu0 %v380
      %398 = vmatmul.f32.gmra.mxu0 %v378
      %v399 = vpop.f32.mrf.mxu0
      %v400 = vadd.f32 0.0, %v399
      %401 = vdwg.mxu0
      %v402 = vsel %vm141, %v400, -inf
      %403 = vmax.xlane.f32.xlu0 %v402
      %v404 = vpop.xlane.xlu0 %403
      %v405 = vsub.f32 %v400, %v404
      %v406 = vmul.f32 %v405, 1.442695
      %v407 = vpow.pop %v406
      %v408 = vsel %vm141, %v407, 0.0
      %409 = vadd.xlane.f32.xlu0 %v408
      %v410 = vpop.xlane.xlu0 %409
      %411 = vrot.lane.b32.xlu0 %v112, 48
      %v412 = vpop.permute.xlu0 %411
      %v415 = vsel %vm141, %v407, 0
      %417 = vmatpush.msra.mxu0 0.0
      %418 = vmatpush.msra.mxu0 0.0
      %419 = vmatpush.msra.mxu0 0.0
      %420 = vmatpush.msra.mxu0 0.0
      %421 = vmatpush.msra.mxu0 0.0
      %422 = vmatpush.msra.mxu0 0.0
      %423 = vmatpush.msra.mxu0 0.0
      %424 = vmatpush.msra.mxu0 0.0
      %425 = vmatpush.msra.mxu0 0.0
      %426 = vmatpush.msra.mxu0 0.0
      %427 = vmatpush.msra.mxu0 0.0
      %428 = vmatpush.msra.mxu0 0.0
      %429 = vmatpush.msra.mxu0 0.0
      %430 = vmatpush.msra.mxu0 0.0
      %431 = vmatpush.msra.mxu0 0.0
      %432 = vmatpush.msra.mxu0 %v412
      %433 = vmatmul.f32.gmra.mxu0 %v415
      %v434 = vpop.f32.mrf.mxu0
      %v435 = vadd.f32 0.0, %v434
      %436 = vdwg.mxu0
      %v437 = vrcp.pop %v410
      %v438 = vmul.f32 %v435, %v437
      %439 = vrot.lane.b32.xlu0 %v112, 108
      %v440 = vpop.permute.xlu0 %439
      %441 = vrot.lane.b32.xlu0 %v112, 76
      %v442 = vpop.permute.xlu0 %441
      %v443 = vsel %vm116, %v440, 0
      %v445 = vsel %vm116, %v442, 0
      %447 = vmatpush.xpose.msra.mxu0 0.0
      %448 = vmatpush.xpose.msra.mxu0 0.0
      %449 = vmatpush.xpose.msra.mxu0 0.0
      %450 = vmatpush.xpose.msra.mxu0 0.0
      %451 = vmatpush.xpose.msra.mxu0 0.0
      %452 = vmatpush.xpose.msra.mxu0 0.0
      %453 = vmatpush.xpose.msra.mxu0 0.0
      %454 = vmatpush.xpose.msra.mxu0 0.0
      %455 = vmatpush.xpose.msra.mxu0 0.0
      %456 = vmatpush.xpose.msra.mxu0 0.0
      %457 = vmatpush.xpose.msra.mxu0 0.0
      %458 = vmatpush.xpose.msra.mxu0 0.0
      %459 = vmatpush.xpose.msra.mxu0 0.0
      %460 = vmatpush.xpose.msra.mxu0 0.0
      %461 = vmatpush.xpose.msra.mxu0 0.0
      %462 = vmatpush.xpose.msra.mxu0 %v445
      %463 = vmatmul.f32.gmra.mxu0 %v443
      %v464 = vpop.f32.mrf.mxu0
      %v465 = vadd.f32 0.0, %v464
      %466 = vdwg.mxu0
      %v467 = vsel %vm141, %v465, -inf
      %468 = vmax.xlane.f32.xlu0 %v467
      %v469 = vpop.xlane.xlu0 %468
      %v470 = vsub.f32 %v465, %v469
      %v471 = vmul.f32 %v470, 1.442695
      %v472 = vpow.pop %v471
      %v473 = vsel %vm141, %v472, 0.0
      %474 = vadd.xlane.f32.xlu0 %v473
      %v475 = vpop.xlane.xlu0 %474
      %476 = vrot.lane.b32.xlu0 %v112, 44
      %v477 = vpop.permute.xlu0 %476
      %v480 = vsel %vm141, %v472, 0
      %482 = vmatpush.msra.mxu0 0.0
      %483 = vmatpush.msra.mxu0 0.0
      %484 = vmatpush.msra.mxu0 0.0
      %485 = vmatpush.msra.mxu0 0.0
      %486 = vmatpush.msra.mxu0 0.0
      %487 = vmatpush.msra.mxu0 0.0
      %488 = vmatpush.msra.mxu0 0.0
      %489 = vmatpush.msra.mxu0 0.0
      %490 = vmatpush.msra.mxu0 0.0
      %491 = vmatpush.msra.mxu0 0.0
      %492 = vmatpush.msra.mxu0 0.0
      %493 = vmatpush.msra.mxu0 0.0
      %494 = vmatpush.msra.mxu0 0.0
      %495 = vmatpush.msra.mxu0 0.0
      %496 = vmatpush.msra.mxu0 0.0
      %497 = vmatpush.msra.mxu0 %v477
      %498 = vmatmul.f32.gmra.mxu0 %v480
      %v499 = vpop.f32.mrf.mxu0
      %v500 = vadd.f32 0.0, %v499
      %501 = vdwg.mxu0
      %v502 = vrcp.pop %v475
      %v503 = vmul.f32 %v500, %v502
      %504 = vrot.lane.b32.xlu0 %v112, 104
      %v505 = vpop.permute.xlu0 %504
      %506 = vrot.lane.b32.xlu0 %v112, 72
      %v507 = vpop.permute.xlu0 %506
      %v508 = vsel %vm116, %v505, 0
      %v510 = vsel %vm116, %v507, 0
      %512 = vmatpush.xpose.msra.mxu0 0.0
      %513 = vmatpush.xpose.msra.mxu0 0.0
      %514 = vmatpush.xpose.msra.mxu0 0.0
      %515 = vmatpush.xpose.msra.mxu0 0.0
      %516 = vmatpush.xpose.msra.mxu0 0.0
      %517 = vmatpush.xpose.msra.mxu0 0.0
      %518 = vmatpush.xpose.msra.mxu0 0.0
      %519 = vmatpush.xpose.msra.mxu0 0.0
      %520 = vmatpush.xpose.msra.mxu0 0.0
      %521 = vmatpush.xpose.msra.mxu0 0.0
      %522 = vmatpush.xpose.msra.mxu0 0.0
      %523 = vmatpush.xpose.msra.mxu0 0.0
      %524 = vmatpush.xpose.msra.mxu0 0.0
      %525 = vmatpush.xpose.msra.mxu0 0.0
      %526 = vmatpush.xpose.msra.mxu0 0.0
      %527 = vmatpush.xpose.msra.mxu0 %v510
      %528 = vmatmul.f32.gmra.mxu0 %v508
      %v529 = vpop.f32.mrf.mxu0
      %v530 = vadd.f32 0.0, %v529
      %531 = vdwg.mxu0
      %v532 = vsel %vm141, %v530, -inf
      %533 = vmax.xlane.f32.xlu0 %v532
      %v534 = vpop.xlane.xlu0 %533
      %v535 = vsub.f32 %v530, %v534
      %v536 = vmul.f32 %v535, 1.442695
      %v537 = vpow.pop %v536
      %v538 = vsel %vm141, %v537, 0.0
      %539 = vadd.xlane.f32.xlu0 %v538
      %v540 = vpop.xlane.xlu0 %539
      %541 = vrot.lane.b32.xlu0 %v112, 40
      %v542 = vpop.permute.xlu0 %541
      %v545 = vsel %vm141, %v537, 0
      %547 = vmatpush.msra.mxu0 0.0
      %548 = vmatpush.msra.mxu0 0.0
      %549 = vmatpush.msra.mxu0 0.0
      %550 = vmatpush.msra.mxu0 0.0
      %551 = vmatpush.msra.mxu0 0.0
      %552 = vmatpush.msra.mxu0 0.0
      %553 = vmatpush.msra.mxu0 0.0
      %554 = vmatpush.msra.mxu0 0.0
      %555 = vmatpush.msra.mxu0 0.0
      %556 = vmatpush.msra.mxu0 0.0
      %557 = vmatpush.msra.mxu0 0.0
      %558 = vmatpush.msra.mxu0 0.0
      %559 = vmatpush.msra.mxu0 0.0
      %560 = vmatpush.msra.mxu0 0.0
      %561 = vmatpush.msra.mxu0 0.0
      %562 = vmatpush.msra.mxu0 %v542
      %563 = vmatmul.f32.gmra.mxu0 %v545
      %v564 = vpop.f32.mrf.mxu0
      %v565 = vadd.f32 0.0, %v564
      %566 = vdwg.mxu0
      %v567 = vrcp.pop %v540
      %v568 = vmul.f32 %v565, %v567
      %569 = vrot.lane.b32.xlu0 %v112, 100
      %v570 = vpop.permute.xlu0 %569
      %571 = vrot.lane.b32.xlu0 %v112, 68
      %v572 = vpop.permute.xlu0 %571
      %v573 = vsel %vm116, %v570, 0
      %v575 = vsel %vm116, %v572, 0
      %577 = vmatpush.xpose.msra.mxu0 0.0
      %578 = vmatpush.xpose.msra.mxu0 0.0
      %579 = vmatpush.xpose.msra.mxu0 0.0
      %580 = vmatpush.xpose.msra.mxu0 0.0
      %581 = vmatpush.xpose.msra.mxu0 0.0
      %582 = vmatpush.xpose.msra.mxu0 0.0
      %583 = vmatpush.xpose.msra.mxu0 0.0
      %584 = vmatpush.xpose.msra.mxu0 0.0
      %585 = vmatpush.xpose.msra.mxu0 0.0
      %586 = vmatpush.xpose.msra.mxu0 0.0
      %587 = vmatpush.xpose.msra.mxu0 0.0
      %588 = vmatpush.xpose.msra.mxu0 0.0
      %589 = vmatpush.xpose.msra.mxu0 0.0
      %590 = vmatpush.xpose.msra.mxu0 0.0
      %591 = vmatpush.xpose.msra.mxu0 0.0
      %592 = vmatpush.xpose.msra.mxu0 %v575
      %593 = vmatmul.f32.gmra.mxu0 %v573
      %v594 = vpop.f32.mrf.mxu0
      %v595 = vadd.f32 0.0, %v594
      %596 = vdwg.mxu0
      %v597 = vsel %vm141, %v595, -inf
      %598 = vmax.xlane.f32.xlu0 %v597
      %v599 = vpop.xlane.xlu0 %598
      %v600 = vsub.f32 %v595, %v599
      %v601 = vmul.f32 %v600, 1.442695
      %v602 = vpow.pop %v601
      %v603 = vsel %vm141, %v602, 0.0
      %604 = vadd.xlane.f32.xlu0 %v603
      %v605 = vpop.xlane.xlu0 %604
      %606 = vrot.lane.b32.xlu0 %v112, 36
      %v607 = vpop.permute.xlu0 %606
      %v610 = vsel %vm141, %v602, 0
      %612 = vmatpush.msra.mxu0 0.0
      %613 = vmatpush.msra.mxu0 0.0
      %614 = vmatpush.msra.mxu0 0.0
      %615 = vmatpush.msra.mxu0 0.0
      %616 = vmatpush.msra.mxu0 0.0
      %617 = vmatpush.msra.mxu0 0.0
      %618 = vmatpush.msra.mxu0 0.0
      %619 = vmatpush.msra.mxu0 0.0
      %620 = vmatpush.msra.mxu0 0.0
      %621 = vmatpush.msra.mxu0 0.0
      %622 = vmatpush.msra.mxu0 0.0
      %623 = vmatpush.msra.mxu0 0.0
      %624 = vmatpush.msra.mxu0 0.0
      %625 = vmatpush.msra.mxu0 0.0
      %626 = vmatpush.msra.mxu0 0.0
      %627 = vmatpush.msra.mxu0 %v607
      %628 = vmatmul.f32.gmra.mxu0 %v610
      %v629 = vpop.f32.mrf.mxu0
      %v630 = vadd.f32 0.0, %v629
      %631 = vdwg.mxu0
      %v632 = vrcp.pop %v605
      %v633 = vmul.f32 %v630, %v632
      %635 = vrot.lane.b32.xlu0 %v243, 4
      %v636 = vpop.permute.xlu0 %635
      %639 = vrot.lane.b32.xlu0 %v308, 8
      %v640 = vpop.permute.xlu0 %639
      %643 = vrot.lane.b32.xlu0 %v373, 12
      %v644 = vpop.permute.xlu0 %643
      %647 = vrot.lane.b32.xlu0 %v438, 16
      %v648 = vpop.permute.xlu0 %647
      %651 = vrot.lane.b32.xlu0 %v503, 20
      %v652 = vpop.permute.xlu0 %651
      %655 = vrot.lane.b32.xlu0 %v568, 24
      %v656 = vpop.permute.xlu0 %655
      %659 = vrot.lane.b32.xlu0 %v633, 28
      %v660 = vpop.permute.xlu0 %659
      %v662 = vsel %vm116, %v178, %v636
      %v663 = vsel %vm141, %v662, %v640
      %vm664 = vcmask 97280
      %v665 = vsel %vm664, %v663, %v644
      %vm666 = vcmask 130048
      %v667 = vsel %vm666, %v665, %v648
      %vm668 = vcmask 162816
      %v669 = vsel %vm668, %v667, %v652
      %vm670 = vcmask 195584
      %v671 = vsel %vm670, %v669, %v656
      %vm672 = vcmask 228352
      %v673 = vsel %vm672, %v671, %v660
      %vm674 = vcmask 261120
      %675 = vst.msk [vmem:[%s111] sm:$0xff] %vm674, %v673
      %p676 = scmp.lt.s32.totalorder %s12, 1
      %s677 = scalar_select %p676, %s12, 1
      %s678 = smul.addr %s677, 8
      %s679 = scalar_lea.vmem %s1, %s678
      // Predicated region
      $region25: #{attention_forward.4} parent=23 // pred_check
        %p680 = pneg %p56
      $region26: #{attention_forward.4} parent=23 // pred_check_branch
        %682 = sbr.rel (%p680) target = $region28
      $region27: #{attention_forward.4} parent=23 // pred_region
        _
      $region28: #{attention_forward.4} parent=23 // pred_fallthru
        _
    $region24: #{attention_forward.4} parent=5 // pred_fallthru
      _
    %p683 = scmp.le.s32.totalorder 2, %s7
    // Predicated region
    $region29: #{attention_forward.4} parent=5 // pred_check
      %p684 = pneg %p683
    $region30: #{attention_forward.4} parent=5 // pred_check_branch
      %686 = sbr.rel (%p684) target = $region32
    $region31: #{attention_forward.4} parent=5 // pred_region
      %s687 = ssub.s32 %s7, 2
      // Predicated region
      $region33: #{attention_forward.4} parent=31 // pred_check
        %p688 = pneg %p62
      $region34: #{attention_forward.4} parent=31 // pred_check_branch
        %690 = sbr.rel (%p688) target = $region36
      $region35: #{attention_forward.4} parent=31 // pred_region
        %p691 = scmp.lt.s32.totalorder %s13, 1
        %s692 = scalar_select %p691, %s13, 1
        %s693 = smul.addr %s692, 8
        %s694 = scalar_lea.vmem %s1, %s693
      $region36: #{attention_forward.4} parent=31 // pred_fallthru
        _
    $region32: #{attention_forward.4} parent=5 // pred_fallthru
      _
  $region6: #{attention_forward.4} parent=0 // loop_footer
    %s11 = sadd.s32 1, %s7
  $region7: #{attention_forward.4} parent=0 // loop_footer_branch
    %6 = sbr.rel target = $region3
  $region8: #{attention_forward.4} parent=0 // loop_exit
    _

</llo_original>
